<compile_context>
chip_gen: v5e
topology: v5e:2x2
jax: 0.10.0
libtpu: 0.0.40
codegen_flags: <defaults>
</compile_context>

<pallas_src>
import jax
import jax.numpy as jnp
from jax import lax
from jax.experimental import pallas as pl
from jax.experimental.pallas import tpu as pltpu


_TAPS = tuple((dy, dx) for dy in range(3) for dx in range(3))


def _leaky(x, slope=0.1):
    return jnp.where(x > 0, x, slope * x)


def _vmem_capacity_bytes():
    try:
        return int(pltpu.get_tpu_info().vmem_capacity_bytes)
    except Exception:
        return 64 * 1024 * 1024          # conservative default (v7x per-core VMEM)


def _pick_block_rows(H, W, cin, chid, cout, budget):
    """Largest divisor of H whose per-step working set fits the VMEM budget."""
    best = 1
    for tr in range(1, H + 1):
        if H % tr:
            continue
        est = (
            2 * tr * W * cin * 4                     # blocked x (double buffered)
            + (tr + 2) * (W + 2) * chid * 4          # padded y1 value
            + tr * W * 9 * chid * 4                  # im2col slab (built f32, cast bf16)
            + 2 * tr * W * cout * 4                  # blocked y2 out (double buffered)
            + 2 * 2 * tr * W * cout * 4              # pass-2 blocked y2 in + out
            + 2 * tr * W * cin * 4                   # pass-2 blocked x in
            + (tr + 2) * (W + 2) * 2 * 4             # spatial-attention map
        )
        if est <= budget:
            best = tr
    return best


def darknet_block(x_nchw, p, block_rows=None):
    """DarknetBlock forward: LeakyReLU(CBAM(CBL3x3(CBL1x1(x))) + x), NCHW in/out."""
    x = jnp.transpose(x_nchw, (0, 2, 3, 1)).astype(jnp.float32)      # NCHW -> NHWC
    N, H, W, Cin = x.shape
    Chid = p["w1"].shape[1]
    Cout = p["w2"].shape[2]
    Catt = p["wc1"].shape[1]
    assert Cin == Cout, "DarknetBlock residual requires in_c == out_c"

    vmem_cap = _vmem_capacity_bytes()
    budget = min(vmem_cap, 128 * 1024 * 1024) // 3
    TR = _pick_block_rows(H, W, Cin, Chid, Cout, budget)
    if block_rows is not None:
        TR = max(d for d in range(1, min(block_rows, TR) + 1) if H % d == 0)
    HT = H // TR

    cparams = pltpu.CompilerParams(
        dimension_semantics=("parallel", "parallel"),                # v7x: use both TCs
        vmem_limit_bytes=int(min(vmem_cap, 128 * 1024 * 1024) * 3 // 4),
    )

    # bf16 operands for the MXU (accumulation stays f32); w2 pre-reshaped to im2col K.
    w1b = p["w1"].astype(jnp.bfloat16)                               # (Cin, Chid)
    w2b = p["w2"].reshape(9 * Chid, Cout).astype(jnp.bfloat16)       # (9*Chid, Cout)

    # ------------- pass 1: y2 = BN(conv3x3(LeakyReLU(BN(conv1x1(x))))) + CA partials
    def pass1_kernel(xt_ref, x_any, w1_ref, s1_ref, b1_ref, w2_ref, s2_ref, b2_ref,
                     y2_ref, ssum_ref, smax_ref, xhalo_ref):
        n = pl.program_id(0)
        i = pl.program_id(1)

        # clamped single-row halo fetches (out-of-image rows are masked to 0 below)
        top = jnp.maximum(i * TR - 1, 0)
        bot = jnp.minimum((i + 1) * TR, H - 1)
        pltpu.sync_copy(x_any.at[n, pl.ds(top, 1)], xhalo_ref.at[pl.ds(0, 1)])
        pltpu.sync_copy(x_any.at[n, pl.ds(bot, 1)], xhalo_ref.at[pl.ds(1, 1)])

        xw = jnp.concatenate([xhalo_ref[0:1], xt_ref[...], xhalo_ref[1:2]], axis=0)

        # CBL(in_c, hide_c, 1): 1x1 conv == channel matmul, folded BN, LeakyReLU(0.1)
        y1 = jnp.dot(xw.reshape((TR + 2) * W, Cin).astype(jnp.bfloat16), w1_ref[...],
                     preferred_element_type=jnp.float32)
        y1 = _leaky(y1 * s1_ref[...] + b1_ref[...]).reshape(TR + 2, W, Chid)

        # rows outside the image contribute zeros to the 3x3 conv (it zero-pads y1)
        r = lax.broadcasted_iota(jnp.int32, (TR + 2, 1, 1), 0)
        orig = i * TR - 1 + r
        y1 = jnp.where((orig >= 0) & (orig < H), y1, 0.0)

        # CBL(hide_c, out_c, 3, act=False): zero-pad W, im2col slab, ONE MXU matmul
        zcol = jnp.zeros((TR + 2, 1, Chid), jnp.float32)
        y1p = jnp.concatenate([zcol, y1, zcol], axis=1)              # (TR+2, W+2, Chid)
        cols = jnp.concatenate(
            [y1p[dy:dy + TR, dx:dx + W, :].reshape(TR * W, Chid) for dy, dx in _TAPS],
            axis=-1).astype(jnp.bfloat16)                            # (TR*W, 9*Chid)
        y2 = jnp.dot(cols, w2_ref[...], preferred_element_type=jnp.float32)
        y2 = y2 * s2_ref[...] + b2_ref[...]                          # folded BN, no act

        y2_ref[...] = y2.reshape(TR, W, Cout)
        ssum_ref[...] = jnp.sum(y2, axis=0, keepdims=True)           # per-tile partials
        smax_ref[...] = jnp.max(y2, axis=0, keepdims=True)

    y2, ssum, smax = pl.pallas_call(
        pass1_kernel,
        grid=(N, HT),
        in_specs=[
            pl.BlockSpec((None, TR, W, Cin), lambda n, i: (n, i, 0, 0)),   # x rows
            pl.BlockSpec(memory_space=pl.ANY),                             # x (halo rows)
            pl.BlockSpec((Cin, Chid), lambda n, i: (0, 0)),                # w1 (bf16)
            pl.BlockSpec((1, Chid), lambda n, i: (0, 0)),                  # s1
            pl.BlockSpec((1, Chid), lambda n, i: (0, 0)),                  # b1
            pl.BlockSpec((9 * Chid, Cout), lambda n, i: (0, 0)),           # w2 (bf16)
            pl.BlockSpec((1, Cout), lambda n, i: (0, 0)),                  # s2
            pl.BlockSpec((1, Cout), lambda n, i: (0, 0)),                  # b2
        ],
        out_specs=[
            pl.BlockSpec((None, TR, W, Cout), lambda n, i: (n, i, 0, 0)),
            pl.BlockSpec((None, None, 1, Cout), lambda n, i: (n, i, 0, 0)),
            pl.BlockSpec((None, None, 1, Cout), lambda n, i: (n, i, 0, 0)),
        ],
        out_shape=(
            jax.ShapeDtypeStruct((N, H, W, Cout), jnp.float32),
            jax.ShapeDtypeStruct((N, HT, 1, Cout), jnp.float32),
            jax.ShapeDtypeStruct((N, HT, 1, Cout), jnp.float32),
        ),
        scratch_shapes=[pltpu.VMEM((2, W, Cin), jnp.float32)],
        compiler_params=cparams,
    )(x, x, w1b, p["s1"], p["b1"], w2b, p["s2"], p["b2"])

    # ------------- pass 2: CBAM channel + spatial attention, residual LeakyReLU(0.1)
    def pass2_kernel(y2t_ref, y2_any, xt_ref, ssum_ref, smax_ref,
                     wc1_ref, wc2_ref, ws_ref, o_ref, y2halo_ref):
        n = pl.program_id(0)
        i = pl.program_id(1)

        # clamped single-row halo fetches of y2; invalid rows zeroed via scalar masks
        top = jnp.maximum(i * TR - 1, 0)
        bot = jnp.minimum((i + 1) * TR, H - 1)
        pltpu.sync_copy(y2_any.at[n, pl.ds(top, 1)], y2halo_ref.at[pl.ds(0, 1)])
        pltpu.sync_copy(y2_any.at[n, pl.ds(bot, 1)], y2halo_ref.at[pl.ds(1, 1)])
        tmask = (i > 0).astype(jnp.float32)
        bmask = (i < HT - 1).astype(jnp.float32)

        # channel attention: global avg/max pool (from pass-1 partials) + shared MLP
        avg = jnp.sum(ssum_ref[...], axis=0) * (1.0 / (H * W))       # (1, Cout)
        mx = jnp.max(smax_ref[...], axis=0)                          # (1, Cout)
        pooled = jnp.concatenate([avg, mx], axis=0)                  # (2, Cout)
        hmid = jnp.maximum(
            jnp.dot(pooled, wc1_ref[...], preferred_element_type=jnp.float32), 0.0)
        z = jnp.dot(hmid, wc2_ref[...], preferred_element_type=jnp.float32)
        ca = jax.nn.sigmoid(jnp.sum(z, axis=0, keepdims=True))       # (1, Cout)

        y3 = y2t_ref[...] * ca                                       # (TR, W, Cout)
        y3t = y2halo_ref[0:1] * (ca * tmask)
        y3b = y2halo_ref[1:2] * (ca * bmask)

        # spatial attention: [mean_c, max_c] -> 3x3 conv (zero pad) -> sigmoid
        y3f = jnp.concatenate([y3t, y3, y3b], axis=0)                # (TR+2, W, Cout)
        m = jnp.concatenate([jnp.mean(y3f, axis=-1, keepdims=True),
                             jnp.max(y3f, axis=-1, keepdims=True)], axis=-1)
        zc = jnp.zeros((TR + 2, 1, 2), jnp.float32)
        m = jnp.concatenate([zc, m, zc], axis=1)                     # (TR+2, W+2, 2)
        sa = jnp.zeros((TR, W, 1), jnp.float32)
        for dy, dx in _TAPS:
            k = (dy * 3 + dx) * 2
            win = m[dy:dy + TR, dx:dx + W, :]
            sa = sa + win[:, :, 0:1] * ws_ref[k] + win[:, :, 1:2] * ws_ref[k + 1]
        sa = jax.nn.sigmoid(sa)

        # residual add + LeakyReLU(0.1)
        o_ref[...] = _leaky(y3 * sa + xt_ref[...])

    out = pl.pallas_call(
        pass2_kernel,
        grid=(N, HT),
        in_specs=[
            pl.BlockSpec((None, TR, W, Cout), lambda n, i: (n, i, 0, 0)),  # y2 rows
            pl.BlockSpec(memory_space=pl.ANY),                             # y2 (halo rows)
            pl.BlockSpec((None, TR, W, Cin), lambda n, i: (n, i, 0, 0)),   # x (residual)
            pl.BlockSpec((None, HT, 1, Cout), lambda n, i: (n, 0, 0, 0)),  # partial sums
            pl.BlockSpec((None, HT, 1, Cout), lambda n, i: (n, 0, 0, 0)),  # partial maxes
            pl.BlockSpec((Cout, Catt), lambda n, i: (0, 0)),               # wc1
            pl.BlockSpec((Catt, Cout), lambda n, i: (0, 0)),               # wc2
            pl.BlockSpec(memory_space=pltpu.MemorySpace.SMEM),             # ws scalars
        ],
        out_specs=pl.BlockSpec((None, TR, W, Cout), lambda n, i: (n, i, 0, 0)),
        out_shape=jax.ShapeDtypeStruct((N, H, W, Cout), jnp.float32),
        scratch_shapes=[pltpu.VMEM((2, W, Cout), jnp.float32)],
        compiler_params=cparams,
    )(y2, y2, x, ssum, smax, p["wc1"], p["wc2"], p["ws"])

    return jnp.transpose(out, (0, 3, 1, 2))                          # NHWC -> NCHW


def _fold_bn(key, c, eps=1e-5):
    k1, k2, k3, k4 = jax.random.split(key, 4)
    gamma = 1.0 + 0.1 * jax.random.normal(k1, (c,), jnp.float32)
    beta = 0.1 * jax.random.normal(k2, (c,), jnp.float32)
    mean = 0.1 * jax.random.normal(k3, (c,), jnp.float32)
    var = 0.5 + jnp.abs(0.5 * jax.random.normal(k4, (c,), jnp.float32))
    scale = gamma / jnp.sqrt(var + eps)
    bias = beta - mean * scale
    return scale.reshape(1, c), bias.reshape(1, c)


def init_params(key, in_c, hide_c, out_c):
    ks = jax.random.split(key, 7)
    s1, b1 = _fold_bn(ks[1], hide_c)
    s2, b2 = _fold_bn(ks[3], out_c)
    return {
        "w1": 0.25 * jax.random.normal(ks[0], (in_c, hide_c), jnp.float32),
        "s1": s1, "b1": b1,
        "w2": 0.10 * jax.random.normal(ks[2], (9, hide_c, out_c), jnp.float32),
        "s2": s2, "b2": b2,
        "wc1": 0.20 * jax.random.normal(ks[4], (out_c, out_c // 4), jnp.float32),
        "wc2": 0.20 * jax.random.normal(ks[5], (out_c // 4, out_c), jnp.float32),
        "ws": 0.20 * jax.random.normal(ks[6], (18,), jnp.float32),   # (3,3,2) flattened
    }


def reference(x_nchw, p):
    """Pure-JAX f32 NHWC reference for numerical verification."""
    x = jnp.transpose(x_nchw, (0, 2, 3, 1)).astype(jnp.float32)
    Chid = p["w1"].shape[1]
    Cout = p["w2"].shape[2]
    y1 = _leaky(jnp.einsum("nhwc,cd->nhwd", x, p["w1"]) * p["s1"] + p["b1"])
    w2_hwio = p["w2"].reshape(3, 3, Chid, Cout)
    y2 = lax.conv_general_dilated(y1, w2_hwio, (1, 1), "SAME",
                                  dimension_numbers=("NHWC", "HWIO", "NHWC"))
    y2 = y2 * p["s2"] + p["b2"]
    avg = y2.mean(axis=(1, 2))
    mx = y2.max(axis=(1, 2))
    mlp = lambda v: jnp.maximum(v @ p["wc1"], 0.0) @ p["wc2"]
    ca = jax.nn.sigmoid(mlp(avg) + mlp(mx))
    y3 = y2 * ca[:, None, None, :]
    sm = jnp.concatenate([y3.mean(3, keepdims=True), y3.max(3, keepdims=True)], axis=3)
    ws_hwio = p["ws"].reshape(3, 3, 2, 1)
    sa = jax.nn.sigmoid(lax.conv_general_dilated(
        sm, ws_hwio, (1, 1), "SAME", dimension_numbers=("NHWC", "HWIO", "NHWC")))
    out = _leaky(y3 * sa + x)
    return jnp.transpose(out, (0, 3, 1, 2))


if __name__ == "__main__":
    N, in_c, H, W = 2, 16, 16, 16
    hide_c, out_c = 8, 16          # residual add requires in_c == out_c

    key = jax.random.PRNGKey(0)
    kx, kp = jax.random.split(key)
    x = jax.random.normal(kx, (N, in_c, H, W), jnp.float32)
    params = init_params(kp, in_c, hide_c, out_c)

    # block_rows=8 -> grid (N, 2): exercises the row-tiled / halo path.
    out = jax.block_until_ready(darknet_block(x, params, block_rows=8))
    ref = reference(x, params)

    assert out.shape == (N, out_c, H, W), out.shape
    # Kernel uses bf16 MXU operands (f32 accumulation); reference is pure f32.
    err = float(jnp.max(jnp.abs(out - ref)))
    assert err < 3e-2, f"max abs err {err}"
    print("KERNEL_OK")
</pallas_src>

<mosaic_0001>
module attributes {stable_mosaic.version = 11 : i64} {
  func.func @pass1_kernel(%arg0: i32, %arg1: i32, %arg2: memref<1x8x16x16xf32, #tpu.memory_space<vmem>>, %arg3: memref<2x16x16x16xf32, #tpu.memory_space<any>>, %arg4: memref<16x8xbf16, #tpu.memory_space<vmem>>, %arg5: memref<1x8xf32, #tpu.memory_space<vmem>>, %arg6: memref<1x8xf32, #tpu.memory_space<vmem>>, %arg7: memref<72x16xbf16, #tpu.memory_space<vmem>>, %arg8: memref<1x16xf32, #tpu.memory_space<vmem>>, %arg9: memref<1x16xf32, #tpu.memory_space<vmem>>, %arg10: memref<1x8x16x16xf32, #tpu.memory_space<vmem>>, %arg11: memref<1x1x1x16xf32, #tpu.memory_space<vmem>>, %arg12: memref<1x1x1x16xf32, #tpu.memory_space<vmem>>, %arg13: memref<2x16x16xf32, #tpu.memory_space<vmem>>) attributes {dimension_semantics = [#tpu.dimension_semantics<parallel>, #tpu.dimension_semantics<parallel>], iteration_bounds = array<i64: 2, 2>, scalar_prefetch = 0 : i64, scratch_operands = 1 : i64, tpu.core_type = #tpu.core_type<tc>, window_params = [{transform_indices = @transform_0, window_bounds = array<i64: 1, 8, 16, 16>}, {}, {pipeline_mode = #tpu.pipeline_mode<synchronous>, transform_indices = @transform_2, window_bounds = array<i64: 16, 8>}, {pipeline_mode = #tpu.pipeline_mode<synchronous>, transform_indices = @transform_3, window_bounds = array<i64: 1, 8>}, {pipeline_mode = #tpu.pipeline_mode<synchronous>, transform_indices = @transform_4, window_bounds = array<i64: 1, 8>}, {pipeline_mode = #tpu.pipeline_mode<synchronous>, transform_indices = @transform_5, window_bounds = array<i64: 72, 16>}, {pipeline_mode = #tpu.pipeline_mode<synchronous>, transform_indices = @transform_6, window_bounds = array<i64: 1, 16>}, {pipeline_mode = #tpu.pipeline_mode<synchronous>, transform_indices = @transform_7, window_bounds = array<i64: 1, 16>}, {transform_indices = @transform_8, window_bounds = array<i64: 1, 8, 16, 16>}, {transform_indices = @transform_9, window_bounds = array<i64: 1, 1, 1, 16>}, {transform_indices = @transform_10, window_bounds = array<i64: 1, 1, 1, 16>}]} {
    %c8_i32 = arith.constant 8 : i32
    %0 = arith.muli %arg1, %c8_i32 : i32
    %c1_i32 = arith.constant 1 : i32
    %1 = arith.subi %0, %c1_i32 : i32
    %c0_i32 = arith.constant 0 : i32
    %2 = arith.maxsi %1, %c0_i32 : i32
    %c1_i32_0 = arith.constant 1 : i32
    %3 = arith.addi %arg1, %c1_i32_0 : i32
    %c8_i32_1 = arith.constant 8 : i32
    %4 = arith.muli %3, %c8_i32_1 : i32
    %c15_i32 = arith.constant 15 : i32
    %5 = arith.minsi %4, %c15_i32 : i32
    "tpu.region"() ({
      %85 = tpu.sem_alloc : memref<!tpu.dma_semaphore, #tpu.memory_space<semaphore_mem>>
      %c0_i32_44 = arith.constant 0 : i32
      %c0_i32_45 = arith.constant 0 : i32
      %86 = tpu.memref_slice %arg3[%arg0, %2, %c0_i32_44, %c0_i32_45] : memref<2x16x16x16xf32, #tpu.memory_space<any>> -> memref<1x1x16x16xf32, #tpu.memory_space<any>>
      %87 = tpu.memref_squeeze %86 : memref<1x1x16x16xf32, #tpu.memory_space<any>> -> memref<1x16x16xf32, #tpu.memory_space<any>>
      %c0_i32_46 = arith.constant 0 : i32
      %c0_i32_47 = arith.constant 0 : i32
      %c0_i32_48 = arith.constant 0 : i32
      %88 = tpu.memref_slice %arg13[%c0_i32_46, %c0_i32_47, %c0_i32_48] : memref<2x16x16xf32, #tpu.memory_space<vmem>> -> memref<1x16x16xf32, #tpu.memory_space<vmem>>
      tpu.enqueue_dma source(%87 : memref<1x16x16xf32, #tpu.memory_space<any>>) target(%88 : memref<1x16x16xf32, #tpu.memory_space<vmem>>) target_semaphore(%85 : memref<!tpu.dma_semaphore, #tpu.memory_space<semaphore_mem>>)
      %c0_i32_49 = arith.constant 0 : i32
      %c0_i32_50 = arith.constant 0 : i32
      %89 = tpu.memref_slice %arg3[%arg0, %2, %c0_i32_49, %c0_i32_50] : memref<2x16x16x16xf32, #tpu.memory_space<any>> -> memref<1x1x16x16xf32, #tpu.memory_space<any>>
      %90 = tpu.memref_squeeze %89 : memref<1x1x16x16xf32, #tpu.memory_space<any>> -> memref<1x16x16xf32, #tpu.memory_space<any>>
      %c0_i32_51 = arith.constant 0 : i32
      %c0_i32_52 = arith.constant 0 : i32
      %c0_i32_53 = arith.constant 0 : i32
      %91 = tpu.memref_slice %arg13[%c0_i32_51, %c0_i32_52, %c0_i32_53] : memref<2x16x16xf32, #tpu.memory_space<vmem>> -> memref<1x16x16xf32, #tpu.memory_space<vmem>>
      tpu.wait_dma2 semaphore(%85 : memref<!tpu.dma_semaphore, #tpu.memory_space<semaphore_mem>>) src(%90 : memref<1x16x16xf32, #tpu.memory_space<any>>) dst(%91 : memref<1x16x16xf32, #tpu.memory_space<vmem>>)
      tpu.yield
    }) : () -> ()
    "tpu.region"() ({
      %85 = tpu.sem_alloc : memref<!tpu.dma_semaphore, #tpu.memory_space<semaphore_mem>>
      %c0_i32_44 = arith.constant 0 : i32
      %c0_i32_45 = arith.constant 0 : i32
      %86 = tpu.memref_slice %arg3[%arg0, %5, %c0_i32_44, %c0_i32_45] : memref<2x16x16x16xf32, #tpu.memory_space<any>> -> memref<1x1x16x16xf32, #tpu.memory_space<any>>
      %87 = tpu.memref_squeeze %86 : memref<1x1x16x16xf32, #tpu.memory_space<any>> -> memref<1x16x16xf32, #tpu.memory_space<any>>
      %c1_i32_46 = arith.constant 1 : i32
      %c0_i32_47 = arith.constant 0 : i32
      %c0_i32_48 = arith.constant 0 : i32
      %88 = tpu.memref_slice %arg13[%c1_i32_46, %c0_i32_47, %c0_i32_48] : memref<2x16x16xf32, #tpu.memory_space<vmem>> -> memref<1x16x16xf32, #tpu.memory_space<vmem>>
      tpu.enqueue_dma source(%87 : memref<1x16x16xf32, #tpu.memory_space<any>>) target(%88 : memref<1x16x16xf32, #tpu.memory_space<vmem>>) target_semaphore(%85 : memref<!tpu.dma_semaphore, #tpu.memory_space<semaphore_mem>>)
      %c0_i32_49 = arith.constant 0 : i32
      %c0_i32_50 = arith.constant 0 : i32
      %89 = tpu.memref_slice %arg3[%arg0, %5, %c0_i32_49, %c0_i32_50] : memref<2x16x16x16xf32, #tpu.memory_space<any>> -> memref<1x1x16x16xf32, #tpu.memory_space<any>>
      %90 = tpu.memref_squeeze %89 : memref<1x1x16x16xf32, #tpu.memory_space<any>> -> memref<1x16x16xf32, #tpu.memory_space<any>>
      %c1_i32_51 = arith.constant 1 : i32
      %c0_i32_52 = arith.constant 0 : i32
      %c0_i32_53 = arith.constant 0 : i32
      %91 = tpu.memref_slice %arg13[%c1_i32_51, %c0_i32_52, %c0_i32_53] : memref<2x16x16xf32, #tpu.memory_space<vmem>> -> memref<1x16x16xf32, #tpu.memory_space<vmem>>
      tpu.wait_dma2 semaphore(%85 : memref<!tpu.dma_semaphore, #tpu.memory_space<semaphore_mem>>) src(%90 : memref<1x16x16xf32, #tpu.memory_space<any>>) dst(%91 : memref<1x16x16xf32, #tpu.memory_space<vmem>>)
      tpu.yield
    }) : () -> ()
    %c0 = arith.constant 0 : index
    %c0_2 = arith.constant 0 : index
    %c0_3 = arith.constant 0 : index
    %6 = vector.load %arg13[%c0, %c0_2, %c0_3] : memref<2x16x16xf32, #tpu.memory_space<vmem>>, vector<1x16x16xf32>
    %c0_4 = arith.constant 0 : index
    %c0_5 = arith.constant 0 : index
    %c0_6 = arith.constant 0 : index
    %c0_7 = arith.constant 0 : index
    %7 = vector.load %arg2[%c0_4, %c0_5, %c0_6, %c0_7] : memref<1x8x16x16xf32, #tpu.memory_space<vmem>>, vector<1x8x16x16xf32>
    %8 = vector.shape_cast %7 : vector<1x8x16x16xf32> to vector<8x16x16xf32>
    %c1 = arith.constant 1 : index
    %c0_8 = arith.constant 0 : index
    %c0_9 = arith.constant 0 : index
    %9 = vector.load %arg13[%c1, %c0_8, %c0_9] : memref<2x16x16xf32, #tpu.memory_space<vmem>>, vector<1x16x16xf32>
    %10 = tpu.concatenate %6, %8, %9 in 0 : vector<1x16x16xf32>, vector<8x16x16xf32>, vector<1x16x16xf32> -> vector<10x16x16xf32>
    %11 = vector.shape_cast %10 : vector<10x16x16xf32> to vector<160x16xf32>
    %12 = arith.truncf %11 : vector<160x16xf32> to vector<160x16xbf16>
    %c0_10 = arith.constant 0 : index
    %c0_11 = arith.constant 0 : index
    %13 = vector.load %arg4[%c0_10, %c0_11] : memref<16x8xbf16, #tpu.memory_space<vmem>>, vector<16x8xbf16>
    %cst = arith.constant dense<0.000000e+00> : vector<160x8xf32>
    %14 = tpu.matmul %12, %13, %cst {dimension_numbers = #tpu.dot_dimension_numbers<[1], [0], [0], [1], [0, 0, 1, 1], [], []>} : vector<160x16xbf16>, vector<16x8xbf16>, vector<160x8xf32> -> vector<160x8xf32>
    %c0_12 = arith.constant 0 : index
    %c0_13 = arith.constant 0 : index
    %15 = vector.load %arg5[%c0_12, %c0_13] : memref<1x8xf32, #tpu.memory_space<vmem>>, vector<1x8xf32>
    %16 = vector.broadcast %15 : vector<1x8xf32> to vector<160x8xf32>
    %17 = arith.mulf %14, %16 : vector<160x8xf32>
    %c0_14 = arith.constant 0 : index
    %c0_15 = arith.constant 0 : index
    %18 = vector.load %arg6[%c0_14, %c0_15] : memref<1x8xf32, #tpu.memory_space<vmem>>, vector<1x8xf32>
    %19 = vector.broadcast %18 : vector<1x8xf32> to vector<160x8xf32>
    %20 = arith.addf %17, %19 : vector<160x8xf32>
    %cst_16 = arith.constant 0.000000e+00 : f32
    %21 = vector.broadcast %cst_16 : f32 to vector<160x8xf32>
    %22 = arith.cmpf ogt, %20, %21 : vector<160x8xf32>
    %cst_17 = arith.constant 1.000000e-01 : f32
    %23 = vector.broadcast %cst_17 : f32 to vector<160x8xf32>
    %24 = arith.mulf %23, %20 : vector<160x8xf32>
    %25 = arith.select %22, %20, %24 : vector<160x8xi1>, vector<160x8xf32>
    %26 = vector.shape_cast %25 : vector<160x8xf32> to vector<10x16x8xf32>
    %27 = tpu.iota {dimensions = array<i32: 0>} : vector<10x1x1xi32>
    %c8_i32_18 = arith.constant 8 : i32
    %28 = arith.muli %arg1, %c8_i32_18 : i32
    %c1_i32_19 = arith.constant 1 : i32
    %29 = arith.subi %28, %c1_i32_19 : i32
    %30 = vector.broadcast %29 : i32 to vector<10x1x1xi32>
    %31 = arith.addi %30, %27 : vector<10x1x1xi32>
    %c0_i32_20 = arith.constant 0 : i32
    %32 = vector.broadcast %c0_i32_20 : i32 to vector<10x1x1xi32>
    %33 = arith.cmpi sge, %31, %32 : vector<10x1x1xi32>
    %c16_i32 = arith.constant 16 : i32
    %34 = vector.broadcast %c16_i32 : i32 to vector<10x1x1xi32>
    %35 = arith.cmpi slt, %31, %34 : vector<10x1x1xi32>
    %36 = arith.andi %33, %35 : vector<10x1x1xi1>
    %cst_21 = arith.constant 0.000000e+00 : f32
    %37 = vector.shape_cast %36 : vector<10x1x1xi1> to vector<10x1x1xi1>
    %38 = vector.broadcast %37 : vector<10x1x1xi1> to vector<10x16x8xi1>
    %39 = vector.broadcast %cst_21 : f32 to vector<10x16x8xf32>
    %40 = arith.select %38, %26, %39 : vector<10x16x8xi1>, vector<10x16x8xf32>
    %cst_22 = arith.constant 0.000000e+00 : f32
    %41 = vector.broadcast %cst_22 : f32 to vector<10x1x8xf32>
    %42 = tpu.concatenate %41, %40, %41 in 1 : vector<10x1x8xf32>, vector<10x16x8xf32>, vector<10x1x8xf32> -> vector<10x18x8xf32>
    %43 = vector.extract_strided_slice %42 {offsets = [0, 0, 0], sizes = [8, 16, 8], strides = [1, 1, 1]} : vector<10x18x8xf32> to vector<8x16x8xf32>
    %44 = vector.shape_cast %43 : vector<8x16x8xf32> to vector<128x8xf32>
    %45 = vector.extract_strided_slice %42 {offsets = [0, 1, 0], sizes = [8, 16, 8], strides = [1, 1, 1]} : vector<10x18x8xf32> to vector<8x16x8xf32>
    %46 = vector.shape_cast %45 : vector<8x16x8xf32> to vector<128x8xf32>
    %47 = vector.extract_strided_slice %42 {offsets = [0, 2, 0], sizes = [8, 16, 8], strides = [1, 1, 1]} : vector<10x18x8xf32> to vector<8x16x8xf32>
    %48 = vector.shape_cast %47 : vector<8x16x8xf32> to vector<128x8xf32>
    %49 = vector.extract_strided_slice %42 {offsets = [1, 0, 0], sizes = [8, 16, 8], strides = [1, 1, 1]} : vector<10x18x8xf32> to vector<8x16x8xf32>
    %50 = vector.shape_cast %49 : vector<8x16x8xf32> to vector<128x8xf32>
    %51 = vector.extract_strided_slice %42 {offsets = [1, 1, 0], sizes = [8, 16, 8], strides = [1, 1, 1]} : vector<10x18x8xf32> to vector<8x16x8xf32>
    %52 = vector.shape_cast %51 : vector<8x16x8xf32> to vector<128x8xf32>
    %53 = vector.extract_strided_slice %42 {offsets = [1, 2, 0], sizes = [8, 16, 8], strides = [1, 1, 1]} : vector<10x18x8xf32> to vector<8x16x8xf32>
    %54 = vector.shape_cast %53 : vector<8x16x8xf32> to vector<128x8xf32>
    %55 = vector.extract_strided_slice %42 {offsets = [2, 0, 0], sizes = [8, 16, 8], strides = [1, 1, 1]} : vector<10x18x8xf32> to vector<8x16x8xf32>
    %56 = vector.shape_cast %55 : vector<8x16x8xf32> to vector<128x8xf32>
    %57 = vector.extract_strided_slice %42 {offsets = [2, 1, 0], sizes = [8, 16, 8], strides = [1, 1, 1]} : vector<10x18x8xf32> to vector<8x16x8xf32>
    %58 = vector.shape_cast %57 : vector<8x16x8xf32> to vector<128x8xf32>
    %59 = vector.extract_strided_slice %42 {offsets = [2, 2, 0], sizes = [8, 16, 8], strides = [1, 1, 1]} : vector<10x18x8xf32> to vector<8x16x8xf32>
    %60 = vector.shape_cast %59 : vector<8x16x8xf32> to vector<128x8xf32>
    %61 = tpu.concatenate %44, %46, %48, %50, %52, %54, %56, %58, %60 in 1 : vector<128x8xf32>, vector<128x8xf32>, vector<128x8xf32>, vector<128x8xf32>, vector<128x8xf32>, vector<128x8xf32>, vector<128x8xf32>, vector<128x8xf32>, vector<128x8xf32> -> vector<128x72xf32>
    %62 = arith.truncf %61 : vector<128x72xf32> to vector<128x72xbf16>
    %c0_23 = arith.constant 0 : index
    %c0_24 = arith.constant 0 : index
    %63 = vector.load %arg7[%c0_23, %c0_24] : memref<72x16xbf16, #tpu.memory_space<vmem>>, vector<72x16xbf16>
    %cst_25 = arith.constant dense<0.000000e+00> : vector<128x16xf32>
    %64 = tpu.matmul %62, %63, %cst_25 {dimension_numbers = #tpu.dot_dimension_numbers<[1], [0], [0], [1], [0, 0, 1, 1], [], []>} : vector<128x72xbf16>, vector<72x16xbf16>, vector<128x16xf32> -> vector<128x16xf32>
    %c0_26 = arith.constant 0 : index
    %c0_27 = arith.constant 0 : index
    %65 = vector.load %arg8[%c0_26, %c0_27] : memref<1x16xf32, #tpu.memory_space<vmem>>, vector<1x16xf32>
    %66 = vector.broadcast %65 : vector<1x16xf32> to vector<128x16xf32>
    %67 = arith.mulf %64, %66 : vector<128x16xf32>
    %c0_28 = arith.constant 0 : index
    %c0_29 = arith.constant 0 : index
    %68 = vector.load %arg9[%c0_28, %c0_29] : memref<1x16xf32, #tpu.memory_space<vmem>>, vector<1x16xf32>
    %69 = vector.broadcast %68 : vector<1x16xf32> to vector<128x16xf32>
    %70 = arith.addf %67, %69 : vector<128x16xf32>
    %71 = vector.shape_cast %70 : vector<128x16xf32> to vector<8x16x16xf32>
    %c0_30 = arith.constant 0 : index
    %c0_31 = arith.constant 0 : index
    %c0_32 = arith.constant 0 : index
    %c0_33 = arith.constant 0 : index
    %72 = vector.load %arg10[%c0_30, %c0_31, %c0_32, %c0_33] : memref<1x8x16x16xf32, #tpu.memory_space<vmem>>, vector<1x8x16x16xf32>
    %73 = vector.shape_cast %72 : vector<1x8x16x16xf32> to vector<8x16x16xf32>
    %74 = vector.shape_cast %71 : vector<8x16x16xf32> to vector<1x8x16x16xf32>
    tpu.vector_store %arg10[%c0_30, %c0_31, %c0_32, %c0_33], %74 {strides = array<i32>} : memref<1x8x16x16xf32, #tpu.memory_space<vmem>>, vector<1x8x16x16xf32>,
    %cst_34 = arith.constant dense<0.000000e+00> : vector<16xf32>
    %75 = vector.multi_reduction <add>, %70, %cst_34 [0] : vector<128x16xf32> to vector<16xf32>
    %76 = vector.shape_cast %75 : vector<16xf32> to vector<1x16xf32>
    %c0_35 = arith.constant 0 : index
    %c0_36 = arith.constant 0 : index
    %c0_37 = arith.constant 0 : index
    %c0_38 = arith.constant 0 : index
    %77 = vector.load %arg11[%c0_35, %c0_36, %c0_37, %c0_38] : memref<1x1x1x16xf32, #tpu.memory_space<vmem>>, vector<1x1x1x16xf32>
    %78 = vector.shape_cast %77 : vector<1x1x1x16xf32> to vector<1x16xf32>
    %79 = vector.shape_cast %76 : vector<1x16xf32> to vector<1x1x1x16xf32>
    tpu.vector_store %arg11[%c0_35, %c0_36, %c0_37, %c0_38], %79 {strides = array<i32>} : memref<1x1x1x16xf32, #tpu.memory_space<vmem>>, vector<1x1x1x16xf32>,
    %cst_39 = arith.constant dense<0xFF800000> : vector<16xf32>
    %80 = vector.multi_reduction <maximumf>, %70, %cst_39 [0] : vector<128x16xf32> to vector<16xf32>
    %81 = vector.shape_cast %80 : vector<16xf32> to vector<1x16xf32>
    %c0_40 = arith.constant 0 : index
    %c0_41 = arith.constant 0 : index
    %c0_42 = arith.constant 0 : index
    %c0_43 = arith.constant 0 : index
    %82 = vector.load %arg12[%c0_40, %c0_41, %c0_42, %c0_43] : memref<1x1x1x16xf32, #tpu.memory_space<vmem>>, vector<1x1x1x16xf32>
    %83 = vector.shape_cast %82 : vector<1x1x1x16xf32> to vector<1x16xf32>
    %84 = vector.shape_cast %81 : vector<1x16xf32> to vector<1x1x1x16xf32>
    tpu.vector_store %arg12[%c0_40, %c0_41, %c0_42, %c0_43], %84 {strides = array<i32>} : memref<1x1x1x16xf32, #tpu.memory_space<vmem>>, vector<1x1x1x16xf32>,
    return
  }
  func.func @transform_0(%arg0: i32, %arg1: i32) -> (i32, i32, i32, i32) {
    %c0_i32 = arith.constant 0 : i32
    %c0_i32_0 = arith.constant 0 : i32
    %c0_i32_1 = arith.constant 0 : i32
    return %arg0, %arg1, %c0_i32, %c0_i32_0 : i32, i32, i32, i32
  }
  func.func @transform_2(%arg0: i32, %arg1: i32) -> (i32, i32) {
    %c0_i32 = arith.constant 0 : i32
    %c0_i32_0 = arith.constant 0 : i32
    %c0_i32_1 = arith.constant 0 : i32
    return %c0_i32, %c0_i32_0 : i32, i32
  }
  func.func @transform_3(%arg0: i32, %arg1: i32) -> (i32, i32) {
    %c0_i32 = arith.constant 0 : i32
    %c0_i32_0 = arith.constant 0 : i32
    %c0_i32_1 = arith.constant 0 : i32
    return %c0_i32, %c0_i32_0 : i32, i32
  }
  func.func @transform_4(%arg0: i32, %arg1: i32) -> (i32, i32) {
    %c0_i32 = arith.constant 0 : i32
    %c0_i32_0 = arith.constant 0 : i32
    %c0_i32_1 = arith.constant 0 : i32
    return %c0_i32, %c0_i32_0 : i32, i32
  }
  func.func @transform_5(%arg0: i32, %arg1: i32) -> (i32, i32) {
    %c0_i32 = arith.constant 0 : i32
    %c0_i32_0 = arith.constant 0 : i32
    %c0_i32_1 = arith.constant 0 : i32
    return %c0_i32, %c0_i32_0 : i32, i32
  }
  func.func @transform_6(%arg0: i32, %arg1: i32) -> (i32, i32) {
    %c0_i32 = arith.constant 0 : i32
    %c0_i32_0 = arith.constant 0 : i32
    %c0_i32_1 = arith.constant 0 : i32
    return %c0_i32, %c0_i32_0 : i32, i32
  }
  func.func @transform_7(%arg0: i32, %arg1: i32) -> (i32, i32) {
    %c0_i32 = arith.constant 0 : i32
    %c0_i32_0 = arith.constant 0 : i32
    %c0_i32_1 = arith.constant 0 : i32
    return %c0_i32, %c0_i32_0 : i32, i32
  }
  func.func @transform_8(%arg0: i32, %arg1: i32) -> (i32, i32, i32, i32) {
    %c0_i32 = arith.constant 0 : i32
    %c0_i32_0 = arith.constant 0 : i32
    %c0_i32_1 = arith.constant 0 : i32
    return %arg0, %arg1, %c0_i32, %c0_i32_0 : i32, i32, i32, i32
  }
  func.func @transform_9(%arg0: i32, %arg1: i32) -> (i32, i32, i32, i32) {
    %c0_i32 = arith.constant 0 : i32
    %c0_i32_0 = arith.constant 0 : i32
    %c0_i32_1 = arith.constant 0 : i32
    return %arg0, %arg1, %c0_i32, %c0_i32_0 : i32, i32, i32, i32
  }
  func.func @transform_10(%arg0: i32, %arg1: i32) -> (i32, i32, i32, i32) {
    %c0_i32 = arith.constant 0 : i32
    %c0_i32_0 = arith.constant 0 : i32
    %c0_i32_1 = arith.constant 0 : i32
    return %arg0, %arg1, %c0_i32, %c0_i32_0 : i32, i32, i32, i32
  }
}

</mosaic_0001>

<llo_original>
// kernel: tpu_custom_call.1
$region0: #{tpu_custom_call.1}
  #allocation0 [shape = 'u32[]', space=smem, size = 0x4, offset = 0x4, fixed_abs, tag = 'smem constant byte address 0x4 - core index']
  #allocation1 [shape = 'u32[72,128]{1,0:T(1,128)}', space=vmem, size = 0x9000, scoped, tag = 'internal scratch']
  #allocation2 [shape = 'f32[2,16,16]{2,1,0:T(8,128)}', space=vmem, size = 0x4000, scoped, tag = 'scratch operand']
  #allocation11 [shape = 's32[]', space=sflag, size = 0x4, offset = 0, fixed_abs, tag = 'sflag constant byte address 0x0 - dummy sync flag']
  #allocation12 [shape = 's32[]', space=sflag, size = 0x4, offset = 0, fixed_abs, tag = 'sflag constant byte address 0x0 - dummy sync flag']
  #allocation13 [shape = 'u32[]', space=smem, size = 0x4, offset = 0x44, fixed_abs, tag = 'smem constant byte address 0x44 - assertion arg 0']
  #allocation14 [shape = 'u32[]', space=smem, size = 0x4, offset = 0x48, fixed_abs, tag = 'smem constant byte address 0x48 - assertion arg 1']
  #allocation16 [shape = 's32[]', space=sflag, size = 0x4, offset = 0, fixed_abs, tag = 'sflag constant byte address 0x0 - dummy sync flag']
  #allocation17 [shape = 's32[]', space=sflag, size = 0x4, offset = 0, fixed_abs, tag = 'sflag constant byte address 0x0 - dummy sync flag']
  %s0 = inlined_call_operand.hbm [shape: f32[2,16,16,16], index: 0, kind: input, shape index: {}]
  %s1 = inlined_call_operand.hbm [shape: f32[2,16,16,16], index: 1, kind: input, shape index: {}]
  %s2 = inlined_call_operand.vmem [shape: bf16[16,8], index: 2, kind: input, shape index: {}]
  %s3 = inlined_call_operand.vmem [shape: f32[1,8], index: 3, kind: input, shape index: {}]
  %s4 = inlined_call_operand.vmem [shape: f32[1,8], index: 4, kind: input, shape index: {}]
  %s5 = inlined_call_operand.vmem [shape: bf16[72,16], index: 5, kind: input, shape index: {}]
  %s6 = inlined_call_operand.vmem [shape: f32[1,16], index: 6, kind: input, shape index: {}]
  %s7 = inlined_call_operand.vmem [shape: f32[1,16], index: 7, kind: input, shape index: {}]
  %s8 = inlined_call_operand.hbm [shape: f32[2,16,16,16], index: 8, kind: output, shape index: {0}]
  %s9 = inlined_call_operand.hbm [shape: f32[2,2,1,16], index: 9, kind: output, shape index: {1}]
  %s10 = inlined_call_operand.hbm [shape: f32[2,2,1,16], index: 10, kind: output, shape index: {2}]
  %11 = xla_tuple %s8, %s9, %s10
  %s12 = sld [smem:[#allocation0]]
  $region91: #{tpu_custom_call.1} parent=0
    _
  %s14 = ssub.s32 1, %s12
  %s15 = scalar_select 0, %s14, %s12
  $region1: #{tpu_custom_call.1} parent=0
    #allocation3 [shape = 'u8[131072]{0}', space=vmem, size = 0x20000, scoped, tag = 'input window, operand 0']
    #allocation4 [shape = 's32[2]{0}', space=sflag, size = 0x8, scoped, tag = 'scoped memory for tpu_custom_call.1']
    #allocation5 [shape = 's32[2]{0}', space=sflag, size = 0x8, scoped, tag = 'scoped memory for tpu_custom_call.1']
    #allocation6 [shape = 'u8[131072]{0}', space=vmem, size = 0x20000, scoped, tag = 'output window, operand 0']
    #allocation7 [shape = 'u8[1024]{0}', space=vmem, size = 0x400, scoped, tag = 'output window, operand 1']
    #allocation8 [shape = 's32[2]{0}', space=sflag, size = 0x8, scoped, tag = 'scoped memory for tpu_custom_call.1']
    #allocation9 [shape = 'u8[1024]{0}', space=vmem, size = 0x400, scoped, tag = 'output window, operand 2']
    %16 = vsyncpa [#allocation4], 0
    %s17 = scalar_lea.sflag [#allocation4], 1
    %18 = vsyncpa %s17, 0
    %19 = vsyncpa [#allocation5], 0
    %s20 = scalar_lea.sflag [#allocation5], 1
    %21 = vsyncpa %s20, 0
    %22 = vsyncpa [#allocation8], 0
    %s23 = scalar_lea.sflag [#allocation8], 1
    %24 = vsyncpa %s23, 0
    loop: start=0, step=1, limit=6
    $region2: #{tpu_custom_call.1} parent=1 // loop_pre_header
      _
    $region3: #{tpu_custom_call.1} parent=1 // loop_header
      %s26 = sphi 0, %s30
      %p27 = scmp.ge.s32.totalorder %s26, 6
      %s33 = sphi 0, %s45
      %s34 = sphi 0, %s41
      %s35 = sphi 0, %s33
      %s36 = sphi 0, %s34
      %s37 = sphi 0, %s35
      %s38 = sphi 0, %s36
      %s50 = sphi 0, %s52
      %s53 = sphi 0, %s50
      %s54 = sphi 0, %s53
      %s70 = sphi 0, %s54
      %s74 = sphi 0, %s74
      %s76 = sphi 0, %s74
      %s77 = sphi 0, %s76
      %s91 = sphi 0, %s77
      %s95 = sphi 0, %s95
      %s97 = sphi 0, %s95
      %s98 = sphi 0, %s97
      %s112 = sphi 0, %s98
      %s116 = sphi 0, %s116
      %s118 = sphi 0, %s116
      %s119 = sphi 0, %s118
      %s133 = sphi 0, %s119
      %s137 = sphi 0, %s137
      %s139 = sphi 0, %s137
      %s140 = sphi 0, %s139
      %s154 = sphi 0, %s140
      %s158 = sphi 0, %s158
      %s160 = sphi 0, %s158
      %s161 = sphi 0, %s160
      %s175 = sphi 0, %s161
      %s179 = sphi 0, %s179
      %s181 = sphi 0, %s179
      %s182 = sphi 0, %s181
      %s196 = sphi 0, %s182
      %s204 = sphi 0, %s206
      %s207 = sphi 0, %s204
      %s208 = sphi 0, %s207
      %s224 = sphi 0, %s208
      %s232 = sphi 0, %s234
      %s235 = sphi 0, %s232
      %s236 = sphi 0, %s235
      %s252 = sphi 0, %s236
      %s260 = sphi 0, %s262
      %s263 = sphi 0, %s260
      %s264 = sphi 0, %s263
      %s280 = sphi 0, %s264
    $region4: #{tpu_custom_call.1} parent=1 // loop_header_branch
      %29 = sbr.rel (%p27) target = $region8
    $region5: #{tpu_custom_call.1} parent=1 // loop_body
      %s31 = ssub.s32 %s26, 1
      %s32 = ssub.s32 %s26, 2
      %s39 = sadd.s32 1, %s34
      %p40 = scmp.ge.s32.totalorder %s39, 2
      %s41 = scalar_select %p40, 0, %s39
      %s42 = sadd.s32 1, %s33
      %s43 = scalar_select %p40, %s42, %s33
      %p44 = scmp.ge.s32.totalorder %s43, 2
      %s45 = scalar_select %p44, 0, %s43
      %s46 = ssub.s32 %s33, %s45
      %s47 = ssub.s32 %s34, %s41
      %s48 = sor.u32 %s46, %s47
      %p49 = scmp.eq.s32.totalorder %s48, 0
      %s51 = sadd.s32 %s50, 1
      %s52 = scalar_select %p49, %s50, %s51
      %p55 = pneg %p49
      %p56 = scmp.eq.s32.totalorder %s26, 3
      %p57 = por %p55, %p56
      %p58 = scmp.ne.s32.totalorder %s50, %s53
      %p59 = scmp.eq.s32.totalorder %s26, 0
      %p60 = por %p58, %p59
      %p61 = scmp.ne.s32.totalorder %s50, %s53
      %p62 = scmp.eq.s32.totalorder %s31, 3
      %p63 = por %p61, %p62
      %p64 = scmp.ne.s32.totalorder %s53, %s54
      %p65 = scmp.eq.s32.totalorder %s31, 0
      %p66 = por %p64, %p65
      %p67 = scmp.ne.s32.totalorder %s53, %s54
      %p68 = scmp.eq.s32.totalorder %s32, 3
      %p69 = por %p67, %p68
      %p71 = scmp.ne.s32.totalorder %s54, %s70
      %p72 = scmp.eq.s32.totalorder %s32, 0
      %p73 = por %p71, %p72
      %s75 = sadd.s32 %s74, 1
      %p78 = scmp.eq.s32.totalorder %s26, 3
      %p79 = scmp.ne.s32.totalorder %s74, %s76
      %p80 = scmp.eq.s32.totalorder %s26, 0
      %p81 = por %p79, %p80
      %p82 = scmp.ne.s32.totalorder %s74, %s76
      %p83 = scmp.eq.s32.totalorder %s31, 3
      %p84 = por %p82, %p83
      %p85 = scmp.ne.s32.totalorder %s76, %s77
      %p86 = scmp.eq.s32.totalorder %s31, 0
      %p87 = por %p85, %p86
      %p88 = scmp.ne.s32.totalorder %s76, %s77
      %p89 = scmp.eq.s32.totalorder %s32, 3
      %p90 = por %p88, %p89
      %p92 = scmp.ne.s32.totalorder %s77, %s91
      %p93 = scmp.eq.s32.totalorder %s32, 0
      %p94 = por %p92, %p93
      %s96 = sadd.s32 %s95, 1
      %p99 = scmp.eq.s32.totalorder %s26, 3
      %p100 = scmp.ne.s32.totalorder %s95, %s97
      %p101 = scmp.eq.s32.totalorder %s26, 0
      %p102 = por %p100, %p101
      %p103 = scmp.ne.s32.totalorder %s95, %s97
      %p104 = scmp.eq.s32.totalorder %s31, 3
      %p105 = por %p103, %p104
      %p106 = scmp.ne.s32.totalorder %s97, %s98
      %p107 = scmp.eq.s32.totalorder %s31, 0
      %p108 = por %p106, %p107
      %p109 = scmp.ne.s32.totalorder %s97, %s98
      %p110 = scmp.eq.s32.totalorder %s32, 3
      %p111 = por %p109, %p110
      %p113 = scmp.ne.s32.totalorder %s98, %s112
      %p114 = scmp.eq.s32.totalorder %s32, 0
      %p115 = por %p113, %p114
      %s117 = sadd.s32 %s116, 1
      %p120 = scmp.eq.s32.totalorder %s26, 3
      %p121 = scmp.ne.s32.totalorder %s116, %s118
      %p122 = scmp.eq.s32.totalorder %s26, 0
      %p123 = por %p121, %p122
      %p124 = scmp.ne.s32.totalorder %s116, %s118
      %p125 = scmp.eq.s32.totalorder %s31, 3
      %p126 = por %p124, %p125
      %p127 = scmp.ne.s32.totalorder %s118, %s119
      %p128 = scmp.eq.s32.totalorder %s31, 0
      %p129 = por %p127, %p128
      %p130 = scmp.ne.s32.totalorder %s118, %s119
      %p131 = scmp.eq.s32.totalorder %s32, 3
      %p132 = por %p130, %p131
      %p134 = scmp.ne.s32.totalorder %s119, %s133
      %p135 = scmp.eq.s32.totalorder %s32, 0
      %p136 = por %p134, %p135
      %s138 = sadd.s32 %s137, 1
      %p141 = scmp.eq.s32.totalorder %s26, 3
      %p142 = scmp.ne.s32.totalorder %s137, %s139
      %p143 = scmp.eq.s32.totalorder %s26, 0
      %p144 = por %p142, %p143
      %p145 = scmp.ne.s32.totalorder %s137, %s139
      %p146 = scmp.eq.s32.totalorder %s31, 3
      %p147 = por %p145, %p146
      %p148 = scmp.ne.s32.totalorder %s139, %s140
      %p149 = scmp.eq.s32.totalorder %s31, 0
      %p150 = por %p148, %p149
      %p151 = scmp.ne.s32.totalorder %s139, %s140
      %p152 = scmp.eq.s32.totalorder %s32, 3
      %p153 = por %p151, %p152
      %p155 = scmp.ne.s32.totalorder %s140, %s154
      %p156 = scmp.eq.s32.totalorder %s32, 0
      %p157 = por %p155, %p156
      %s159 = sadd.s32 %s158, 1
      %p162 = scmp.eq.s32.totalorder %s26, 3
      %p163 = scmp.ne.s32.totalorder %s158, %s160
      %p164 = scmp.eq.s32.totalorder %s26, 0
      %p165 = por %p163, %p164
      %p166 = scmp.ne.s32.totalorder %s158, %s160
      %p167 = scmp.eq.s32.totalorder %s31, 3
      %p168 = por %p166, %p167
      %p169 = scmp.ne.s32.totalorder %s160, %s161
      %p170 = scmp.eq.s32.totalorder %s31, 0
      %p171 = por %p169, %p170
      %p172 = scmp.ne.s32.totalorder %s160, %s161
      %p173 = scmp.eq.s32.totalorder %s32, 3
      %p174 = por %p172, %p173
      %p176 = scmp.ne.s32.totalorder %s161, %s175
      %p177 = scmp.eq.s32.totalorder %s32, 0
      %p178 = por %p176, %p177
      %s180 = sadd.s32 %s179, 1
      %p183 = scmp.eq.s32.totalorder %s26, 3
      %p184 = scmp.ne.s32.totalorder %s179, %s181
      %p185 = scmp.eq.s32.totalorder %s26, 0
      %p186 = por %p184, %p185
      %p187 = scmp.ne.s32.totalorder %s179, %s181
      %p188 = scmp.eq.s32.totalorder %s31, 3
      %p189 = por %p187, %p188
      %p190 = scmp.ne.s32.totalorder %s181, %s182
      %p191 = scmp.eq.s32.totalorder %s31, 0
      %p192 = por %p190, %p191
      %p193 = scmp.ne.s32.totalorder %s181, %s182
      %p194 = scmp.eq.s32.totalorder %s32, 3
      %p195 = por %p193, %p194
      %p197 = scmp.ne.s32.totalorder %s182, %s196
      %p198 = scmp.eq.s32.totalorder %s32, 0
      %p199 = por %p197, %p198
      %s200 = ssub.s32 %s33, %s45
      %s201 = ssub.s32 %s34, %s41
      %s202 = sor.u32 %s200, %s201
      %p203 = scmp.eq.s32.totalorder %s202, 0
      %s205 = sadd.s32 %s204, 1
      %s206 = scalar_select %p203, %s204, %s205
      %p209 = pneg %p203
      %p210 = scmp.eq.s32.totalorder %s26, 3
      %p211 = por %p209, %p210
      %p212 = scmp.ne.s32.totalorder %s204, %s207
      %p213 = scmp.eq.s32.totalorder %s26, 0
      %p214 = por %p212, %p213
      %p215 = scmp.ne.s32.totalorder %s204, %s207
      %p216 = scmp.eq.s32.totalorder %s31, 3
      %p217 = por %p215, %p216
      %p218 = scmp.ne.s32.totalorder %s207, %s208
      %p219 = scmp.eq.s32.totalorder %s31, 0
      %p220 = por %p218, %p219
      %p221 = scmp.ne.s32.totalorder %s207, %s208
      %p222 = scmp.eq.s32.totalorder %s32, 3
      %p223 = por %p221, %p222
      %p225 = scmp.ne.s32.totalorder %s208, %s224
      %p226 = scmp.eq.s32.totalorder %s32, 0
      %p227 = por %p225, %p226
      %s228 = ssub.s32 %s33, %s45
      %s229 = ssub.s32 %s34, %s41
      %s230 = sor.u32 %s228, %s229
      %p231 = scmp.eq.s32.totalorder %s230, 0
      %s233 = sadd.s32 %s232, 1
      %s234 = scalar_select %p231, %s232, %s233
      %p237 = pneg %p231
      %p238 = scmp.eq.s32.totalorder %s26, 3
      %p239 = por %p237, %p238
      %p240 = scmp.ne.s32.totalorder %s232, %s235
      %p241 = scmp.eq.s32.totalorder %s26, 0
      %p242 = por %p240, %p241
      %p243 = scmp.ne.s32.totalorder %s232, %s235
      %p244 = scmp.eq.s32.totalorder %s31, 3
      %p245 = por %p243, %p244
      %p246 = scmp.ne.s32.totalorder %s235, %s236
      %p247 = scmp.eq.s32.totalorder %s31, 0
      %p248 = por %p246, %p247
      %p249 = scmp.ne.s32.totalorder %s235, %s236
      %p250 = scmp.eq.s32.totalorder %s32, 3
      %p251 = por %p249, %p250
      %p253 = scmp.ne.s32.totalorder %s236, %s252
      %p254 = scmp.eq.s32.totalorder %s32, 0
      %p255 = por %p253, %p254
      %s256 = ssub.s32 %s33, %s45
      %s257 = ssub.s32 %s34, %s41
      %s258 = sor.u32 %s256, %s257
      %p259 = scmp.eq.s32.totalorder %s258, 0
      %s261 = sadd.s32 %s260, 1
      %s262 = scalar_select %p259, %s260, %s261
      %p265 = pneg %p259
      %p266 = scmp.eq.s32.totalorder %s26, 3
      %p267 = por %p265, %p266
      %p268 = scmp.ne.s32.totalorder %s260, %s263
      %p269 = scmp.eq.s32.totalorder %s26, 0
      %p270 = por %p268, %p269
      %p271 = scmp.ne.s32.totalorder %s260, %s263
      %p272 = scmp.eq.s32.totalorder %s31, 3
      %p273 = por %p271, %p272
      %p274 = scmp.ne.s32.totalorder %s263, %s264
      %p275 = scmp.eq.s32.totalorder %s31, 0
      %p276 = por %p274, %p275
      %p277 = scmp.ne.s32.totalorder %s263, %s264
      %p278 = scmp.eq.s32.totalorder %s32, 3
      %p279 = por %p277, %p278
      %p281 = scmp.ne.s32.totalorder %s264, %s280
      %p282 = scmp.eq.s32.totalorder %s32, 0
      %p283 = por %p281, %p282
      %p284 = scmp.le.s32.totalorder 1, %s26
      %p285 = scmp.lt.s32.totalorder %s26, 5
      %p286 = pnand %p284, %p285
      %p287 = pneg %p286
      // Predicated region
      $region9: #{tpu_custom_call.1} parent=5 // pred_check
        _
      $region10: #{tpu_custom_call.1} parent=5 // pred_check_branch
        %289 = sbr.rel (%p286) target = $region12
      $region11: #{tpu_custom_call.1} parent=5 // pred_region
        %s290 = ssub.s32 %s26, 1
        // Predicated region
        $region13: #{tpu_custom_call.1} parent=11 // pred_check
          %p291 = pneg %p87
        $region14: #{tpu_custom_call.1} parent=11 // pred_check_branch
          %293 = sbr.rel (%p291) target = $region16
        $region15: #{tpu_custom_call.1} parent=11 // pred_region
          _
        $region16: #{tpu_custom_call.1} parent=11 // pred_fallthru
          _
        // Predicated region
        $region17: #{tpu_custom_call.1} parent=11 // pred_check
          %p294 = pneg %p108
        $region18: #{tpu_custom_call.1} parent=11 // pred_check_branch
          %296 = sbr.rel (%p294) target = $region20
        $region19: #{tpu_custom_call.1} parent=11 // pred_region
          _
        $region20: #{tpu_custom_call.1} parent=11 // pred_fallthru
          _
        // Predicated region
        $region21: #{tpu_custom_call.1} parent=11 // pred_check
          %p297 = pneg %p129
        $region22: #{tpu_custom_call.1} parent=11 // pred_check_branch
          %299 = sbr.rel (%p297) target = $region24
        $region23: #{tpu_custom_call.1} parent=11 // pred_region
          _
        $region24: #{tpu_custom_call.1} parent=11 // pred_fallthru
          _
        // Predicated region
        $region25: #{tpu_custom_call.1} parent=11 // pred_check
          %p300 = pneg %p150
        $region26: #{tpu_custom_call.1} parent=11 // pred_check_branch
          %302 = sbr.rel (%p300) target = $region28
        $region27: #{tpu_custom_call.1} parent=11 // pred_region
          _
        $region28: #{tpu_custom_call.1} parent=11 // pred_fallthru
          _
        // Predicated region
        $region29: #{tpu_custom_call.1} parent=11 // pred_check
          %p303 = pneg %p171
        $region30: #{tpu_custom_call.1} parent=11 // pred_check_branch
          %305 = sbr.rel (%p303) target = $region32
        $region31: #{tpu_custom_call.1} parent=11 // pred_region
          _
        $region32: #{tpu_custom_call.1} parent=11 // pred_fallthru
          _
        // Predicated region
        $region33: #{tpu_custom_call.1} parent=11 // pred_check
          %p306 = pneg %p192
        $region34: #{tpu_custom_call.1} parent=11 // pred_check_branch
          %308 = sbr.rel (%p306) target = $region36
        $region35: #{tpu_custom_call.1} parent=11 // pred_region
          _
        $region36: #{tpu_custom_call.1} parent=11 // pred_fallthru
          _
      $region12: #{tpu_custom_call.1} parent=5 // pred_fallthru
        _
      %p309 = scmp.lt.s32.totalorder %s26, 4
      // Predicated region
      $region37: #{tpu_custom_call.1} parent=5 // pred_check
        %p310 = pneg %p309
      $region38: #{tpu_custom_call.1} parent=5 // pred_check_branch
        %312 = sbr.rel (%p310) target = $region40
      $region39: #{tpu_custom_call.1} parent=5 // pred_region
        // Predicated region
        $region41: #{tpu_custom_call.1} parent=39 // pred_check
          %p313 = pneg %p60
        $region42: #{tpu_custom_call.1} parent=39 // pred_check_branch
          %315 = sbr.rel (%p313) target = $region44
        $region43: #{tpu_custom_call.1} parent=39 // pred_region
          %s316 = sand.u32 %s50, 1
          %s317 = scalar_lea.sflag [#allocation4], %s316
          %s318 = sand.u32 %s50, 1
          %s319 = smul.addr %s318, 128
          %s320 = scalar_lea.vmem [#allocation3], %s319
          %s321 = smul.u32 8, %s34
          %323 = vsyncadd %s317, 0
          %s324 = smul.addr %s321, 2
          %s325 = smul.addr %s33, 32
          %s326 = sadd.s32 %s324, %s325
          %s327 = smul.addr %s326, 8
          %s328 = scalar_lea.hbm %s0, %s327
          %s329 = sshll.u32 %s328, 4
          %s330 = int_to_ptr.hbm [resolvable:$true] %s329
          %s331 = sshll.u32 %s320, 4
          %s332 = int_to_ptr.vmem [resolvable:$true] %s331
          %337 = dma.hbm_to_vmem [thread:$0]  %s330, 2048, %s332, %s317, 128, 128, 8
        $region44: #{tpu_custom_call.1} parent=39 // pred_fallthru
          _
      $region40: #{tpu_custom_call.1} parent=5 // pred_fallthru
        _
      %p338 = scmp.le.s32.totalorder 1, %s26
      %p339 = scmp.lt.s32.totalorder %s26, 5
      %p340 = pnand %p338, %p339
      %p341 = pneg %p340
      // Predicated region
      $region45: #{tpu_custom_call.1} parent=5 // pred_check
        _
      $region46: #{tpu_custom_call.1} parent=5 // pred_check_branch
        %343 = sbr.rel (%p340) target = $region48
      $region47: #{tpu_custom_call.1} parent=5 // pred_region
        %s344 = ssub.s32 %s26, 1
        %s345 = sand.u32 %s53, 1
        %s346 = scalar_lea.sflag [#allocation4], %s345
        %s347 = sand.u32 %s53, 1
        %s348 = smul.addr %s347, 128
        %s349 = scalar_lea.vmem [#allocation3], %s348
        // Predicated region
        $region49: #{tpu_custom_call.1} parent=47 // pred_check
          %p350 = pneg %p66
        $region50: #{tpu_custom_call.1} parent=47 // pred_check_branch
          %352 = sbr.rel (%p350) target = $region52
        $region51: #{tpu_custom_call.1} parent=47 // pred_region
          %354 = dma.done %s346, 2048
        $region52: #{tpu_custom_call.1} parent=47 // pred_fallthru
          _
        %s355 = sand.u32 %s53, 1
        %s356 = scalar_lea.sflag [#allocation4], %s355
        %s357 = sand.u32 %s53, 1
        %s358 = smul.addr %s357, 128
        %s359 = scalar_lea.vmem [#allocation3], %s358
        %p360 = pneg %p66
        %p361 = pneg %p63
        %p362 = pneg %p87
        %p363 = pneg %p84
        %p364 = pneg %p108
        %p365 = pneg %p105
        %p366 = pneg %p129
        %p367 = pneg %p126
        %p368 = pneg %p150
        %p369 = pneg %p147
        %p370 = pneg %p171
        %p371 = pneg %p168
        %p372 = pneg %p192
        %p373 = pneg %p189
        %p374 = pneg %p220
        %p375 = pneg %p217
        %s376 = sand.u32 %s207, 1
        %s377 = scalar_lea.sflag [#allocation5], %s376
        %s378 = sand.u32 %s207, 1
        %s379 = smul.addr %s378, 128
        %s380 = scalar_lea.vmem [#allocation6], %s379
        %p381 = pneg %p248
        %p382 = pneg %p245
        %s383 = sand.u32 %s31, 1
        %s384 = scalar_lea.sflag [#allocation8], %s383
        %s385 = sand.u32 %s235, 1
        %s386 = scalar_lea.vmem [#allocation7], %s385
        %p387 = pneg %p276
        %p388 = pneg %p273
        %s389 = sand.u32 %s31, 1
        %s390 = scalar_lea.sflag [#allocation8], %s389
        %s391 = sand.u32 %s263, 1
        %s392 = scalar_lea.vmem [#allocation9], %s391
        %s393 = smul.u32 8, %s36
        %s394 = smul.u32 8, %s36
        %s396 = smul.u32 %s36, 8
        %s397 = ssub.s32 %s396, 1
        %p398 = scmp.gt.s32.totalorder %s397, 0
        %s399 = scalar_select %p398, %s397, 0
        %s400 = sadd.s32 %s36, 1
        %s401 = smul.u32 %s400, 8
        %p402 = scmp.lt.s32.totalorder %s401, 15
        %s403 = scalar_select %p402, %s401, 15
        $region53: #{tpu_custom_call.1} parent=47
          #allocation10 [shape = 's32[1]{0}', space=sflag, size = 0x4, scoped, tag = 'scoped memory for tpu_custom_call.1']
          %s404 = smul.u32 %s399, 16
          %s405 = smul.u32 %s35, 256
          %s406 = sadd.s32 %s404, %s405
          %s407 = scalar_lea.hbm %s1, %s406
          // Predicated region
          $region54: #{tpu_custom_call.1} parent=53 // pred_check
            _
          $region55: #{tpu_custom_call.1} parent=53 // pred_check_branch
            %409 = sbr.rel target = $region57
          $region56: #{tpu_custom_call.1} parent=53 // pred_region
            %410 = sst [smem:[#allocation13]] [#allocation12]
            %411 = sst [smem:[#allocation14]] [#allocation11]
          $region57: #{tpu_custom_call.1} parent=53 // pred_fallthru
            _
          %413 = shalt.err (0)
          %s415 = sshll.u32 %s407, 4
          %s416 = int_to_ptr.hbm [resolvable:$true] %s415
          %s417 = sshll.u32 [#allocation2], 4
          %s418 = int_to_ptr.vmem [resolvable:$true] %s417
          %420 = dma.hbm_to_vmem [thread:$0]  %s416, 256, %s418, [#allocation10]
          %s421 = smul.u32 1, 16
          %s422 = smul.u32 %s421, 1
          %s423 = sshll.u32 %s422, 4
          %424 = dma.done [#allocation10], %s423
        $region58: #{tpu_custom_call.1} parent=47
          #allocation15 [shape = 's32[1]{0}', space=sflag, size = 0x4, scoped, tag = 'scoped memory for tpu_custom_call.1']
          %s425 = smul.u32 %s403, 16
          %s426 = smul.u32 %s35, 256
          %s427 = sadd.s32 %s425, %s426
          %s428 = scalar_lea.hbm %s1, %s427
          %s429 = scalar_lea.vmem [#allocation2], 16
          // Predicated region
          $region59: #{tpu_custom_call.1} parent=58 // pred_check
            _
          $region60: #{tpu_custom_call.1} parent=58 // pred_check_branch
            %431 = sbr.rel target = $region62
          $region61: #{tpu_custom_call.1} parent=58 // pred_region
            %432 = sst [smem:[#allocation13]] [#allocation17]
            %433 = sst [smem:[#allocation14]] [#allocation16]
          $region62: #{tpu_custom_call.1} parent=58 // pred_fallthru
            _
          %435 = shalt.err (0)
          %s437 = sshll.u32 %s428, 4
          %s438 = int_to_ptr.hbm [resolvable:$true] %s437
          %s439 = sshll.u32 %s429, 4
          %s440 = int_to_ptr.vmem [resolvable:$true] %s439
          %442 = dma.hbm_to_vmem [thread:$0]  %s438, 256, %s440, [#allocation15]
          %s443 = smul.u32 1, 16
          %s444 = smul.u32 %s443, 1
          %s445 = sshll.u32 %s444, 4
          %446 = dma.done [#allocation15], %s445
        %v447 = vld [vmem:[#allocation2] sm:$0xff]
        %v448 = vld [vmem:[#allocation2 + $0x8] sm:$0xff]
        %v449 = vld [vmem:[%s349] sm:$0xff]
        %v450 = vld [vmem:[%s349 + $0x8] sm:$0xff]
        %v451 = vld [vmem:[%s349 + $0x10] sm:$0xff]
        %v452 = vld [vmem:[%s349 + $0x18] sm:$0xff]
        %v453 = vld [vmem:[%s349 + $0x20] sm:$0xff]
        %v454 = vld [vmem:[%s349 + $0x28] sm:$0xff]
        %v455 = vld [vmem:[%s349 + $0x30] sm:$0xff]
        %v456 = vld [vmem:[%s349 + $0x38] sm:$0xff]
        %v457 = vld [vmem:[%s349 + $0x40] sm:$0xff]
        %v458 = vld [vmem:[%s349 + $0x48] sm:$0xff]
        %v459 = vld [vmem:[%s349 + $0x50] sm:$0xff]
        %v460 = vld [vmem:[%s349 + $0x58] sm:$0xff]
        %v461 = vld [vmem:[%s349 + $0x60] sm:$0xff]
        %v462 = vld [vmem:[%s349 + $0x68] sm:$0xff]
        %v463 = vld [vmem:[%s349 + $0x70] sm:$0xff]
        %v464 = vld [vmem:[%s349 + $0x78] sm:$0xff]
        %s465 = scalar_lea.vmem [#allocation2], 16
        %v466 = vld [vmem:[%s465] sm:$0xff]
        %v467 = vld [vmem:[%s465 + $0x8] sm:$0xff]
        %v468 = vpack.c.bf16 %v448, %v447
        %v469 = vpack.c.bf16 %v450, %v449
        %v470 = vpack.c.bf16 %v452, %v451
        %v471 = vpack.c.bf16 %v454, %v453
        %v472 = vpack.c.bf16 %v456, %v455
        %v473 = vpack.c.bf16 %v458, %v457
        %v474 = vpack.c.bf16 %v460, %v459
        %v475 = vpack.c.bf16 %v462, %v461
        %v476 = vpack.c.bf16 %v464, %v463
        %v477 = vpack.c.bf16 %v467, %v466
        %v478 = vld [vmem:[%s2] sm:$0xf]
        %v479 = vld [vmem:[%s2 + $0x4] sm:$0xf]
        %v482 = vunpack.c.l.b16 %v478
        %v483 = vunpack.c.l.b16 %v479
        %v484 = vpack.c.b16 %v483, %v482
        %vm486 = vcmask 130048
        %v488 = vsel %vm486, %v468, 0
        %v491 = vsel %vm486, %v469, 0
        %v494 = vsel %vm486, %v470, 0
        %v497 = vsel %vm486, %v471, 0
        %v500 = vsel %vm486, %v472, 0
        %v503 = vsel %vm486, %v473, 0
        %v506 = vsel %vm486, %v474, 0
        %v509 = vsel %vm486, %v475, 0
        %v512 = vsel %vm486, %v476, 0
        %v515 = vsel %vm486, %v477, 0
        %517 = vmatpush.bf16.msra.mxu0 0
        %518 = vmatpush.bf16.msra.mxu0 0
        %519 = vmatpush.bf16.msra.mxu0 0
        %520 = vmatpush.bf16.msra.mxu0 0
        %521 = vmatpush.bf16.msra.mxu0 0
        %522 = vmatpush.bf16.msra.mxu0 0
        %523 = vmatpush.bf16.msra.mxu0 0
        %524 = vmatpush.bf16.msra.mxu0 %v484
        %525 = vmatmul.bf16.gmra.mxu0 %v488
        %v526 = vpop.f32.mrf.mxu0
        %v527 = vadd.f32 0.0, %v526
        %v528 = vpop.f32.mrf.mxu0
        %v529 = vadd.f32 0.0, %v528
        %530 = vmatmul.bf16.gmra.mxu0 %v491
        %v531 = vpop.f32.mrf.mxu0
        %v532 = vadd.f32 0.0, %v531
        %v533 = vpop.f32.mrf.mxu0
        %v534 = vadd.f32 0.0, %v533
        %535 = vmatmul.bf16.gmra.mxu0 %v494
        %v536 = vpop.f32.mrf.mxu0
        %v537 = vadd.f32 0.0, %v536
        %v538 = vpop.f32.mrf.mxu0
        %v539 = vadd.f32 0.0, %v538
        %540 = vmatmul.bf16.gmra.mxu0 %v497
        %v541 = vpop.f32.mrf.mxu0
        %v542 = vadd.f32 0.0, %v541
        %v543 = vpop.f32.mrf.mxu0
        %v544 = vadd.f32 0.0, %v543
        %545 = vmatmul.bf16.gmra.mxu0 %v500
        %v546 = vpop.f32.mrf.mxu0
        %v547 = vadd.f32 0.0, %v546
        %v548 = vpop.f32.mrf.mxu0
        %v549 = vadd.f32 0.0, %v548
        %550 = vmatmul.bf16.gmra.mxu0 %v503
        %v551 = vpop.f32.mrf.mxu0
        %v552 = vadd.f32 0.0, %v551
        %v553 = vpop.f32.mrf.mxu0
        %v554 = vadd.f32 0.0, %v553
        %555 = vmatmul.bf16.gmra.mxu0 %v506
        %v556 = vpop.f32.mrf.mxu0
        %v557 = vadd.f32 0.0, %v556
        %v558 = vpop.f32.mrf.mxu0
        %v559 = vadd.f32 0.0, %v558
        %560 = vmatmul.bf16.gmra.mxu0 %v509
        %v561 = vpop.f32.mrf.mxu0
        %v562 = vadd.f32 0.0, %v561
        %v563 = vpop.f32.mrf.mxu0
        %v564 = vadd.f32 0.0, %v563
        %565 = vmatmul.bf16.gmra.mxu0 %v512
        %v566 = vpop.f32.mrf.mxu0
        %v567 = vadd.f32 0.0, %v566
        %v568 = vpop.f32.mrf.mxu0
        %v569 = vadd.f32 0.0, %v568
        %570 = vmatmul.bf16.gmra.mxu0 %v515
        %v571 = vpop.f32.mrf.mxu0
        %v572 = vadd.f32 0.0, %v571
        %v573 = vpop.f32.mrf.mxu0
        %v574 = vadd.f32 0.0, %v573
        %575 = vdwg.mxu0
        %v576 = vld [vmem:[%s3] sm:$0x1]
        %v578 = vperm.slane %v576, 0
        %v580 = vmul.f32 %v527, %v578
        %v581 = vmul.f32 %v529, %v578
        %v582 = vmul.f32 %v532, %v578
        %v583 = vmul.f32 %v534, %v578
        %v584 = vmul.f32 %v537, %v578
        %v585 = vmul.f32 %v539, %v578
        %v586 = vmul.f32 %v542, %v578
        %v587 = vmul.f32 %v544, %v578
        %v588 = vmul.f32 %v547, %v578
        %v589 = vmul.f32 %v549, %v578
        %v590 = vmul.f32 %v552, %v578
        %v591 = vmul.f32 %v554, %v578
        %v592 = vmul.f32 %v557, %v578
        %v593 = vmul.f32 %v559, %v578
        %v594 = vmul.f32 %v562, %v578
        %v595 = vmul.f32 %v564, %v578
        %v596 = vmul.f32 %v567, %v578
        %v597 = vmul.f32 %v569, %v578
        %v598 = vmul.f32 %v572, %v578
        %v599 = vmul.f32 %v574, %v578
        %v600 = vld [vmem:[%s4] sm:$0x1]
        %v602 = vperm.slane %v600, 0
        %v604 = vadd.f32 %v580, %v602
        %v605 = vadd.f32 %v581, %v602
        %v606 = vadd.f32 %v582, %v602
        %v607 = vadd.f32 %v583, %v602
        %v608 = vadd.f32 %v584, %v602
        %v609 = vadd.f32 %v585, %v602
        %v610 = vadd.f32 %v586, %v602
        %v611 = vadd.f32 %v587, %v602
        %v612 = vadd.f32 %v588, %v602
        %v613 = vadd.f32 %v589, %v602
        %v614 = vadd.f32 %v590, %v602
        %v615 = vadd.f32 %v591, %v602
        %v616 = vadd.f32 %v592, %v602
        %v617 = vadd.f32 %v593, %v602
        %v618 = vadd.f32 %v594, %v602
        %v619 = vadd.f32 %v595, %v602
        %v620 = vadd.f32 %v596, %v602
        %v621 = vadd.f32 %v597, %v602
        %v622 = vadd.f32 %v598, %v602
        %v623 = vadd.f32 %v599, %v602
        %vm624 = vcmp.gt.f32.partialorder %v604, 0.0
        %vm625 = vcmp.gt.f32.partialorder %v605, 0.0
        %vm626 = vcmp.gt.f32.partialorder %v606, 0.0
        %vm627 = vcmp.gt.f32.partialorder %v607, 0.0
        %vm628 = vcmp.gt.f32.partialorder %v608, 0.0
        %vm629 = vcmp.gt.f32.partialorder %v609, 0.0
        %vm630 = vcmp.gt.f32.partialorder %v610, 0.0
        %vm631 = vcmp.gt.f32.partialorder %v611, 0.0
        %vm632 = vcmp.gt.f32.partialorder %v612, 0.0
        %vm633 = vcmp.gt.f32.partialorder %v613, 0.0
        %vm634 = vcmp.gt.f32.partialorder %v614, 0.0
        %vm635 = vcmp.gt.f32.partialorder %v615, 0.0
        %vm636 = vcmp.gt.f32.partialorder %v616, 0.0
        %vm637 = vcmp.gt.f32.partialorder %v617, 0.0
        %vm638 = vcmp.gt.f32.partialorder %v618, 0.0
        %vm639 = vcmp.gt.f32.partialorder %v619, 0.0
        %vm640 = vcmp.gt.f32.partialorder %v620, 0.0
        %vm641 = vcmp.gt.f32.partialorder %v621, 0.0
        %vm642 = vcmp.gt.f32.partialorder %v622, 0.0
        %vm643 = vcmp.gt.f32.partialorder %v623, 0.0
        %v644 = vmul.f32 %v604, 0.1
        %v645 = vmul.f32 %v605, 0.1
        %v646 = vmul.f32 %v606, 0.1
        %v647 = vmul.f32 %v607, 0.1
        %v648 = vmul.f32 %v608, 0.1
        %v649 = vmul.f32 %v609, 0.1
        %v650 = vmul.f32 %v610, 0.1
        %v651 = vmul.f32 %v611, 0.1
        %v652 = vmul.f32 %v612, 0.1
        %v653 = vmul.f32 %v613, 0.1
        %v654 = vmul.f32 %v614, 0.1
        %v655 = vmul.f32 %v615, 0.1
        %v656 = vmul.f32 %v616, 0.1
        %v657 = vmul.f32 %v617, 0.1
        %v658 = vmul.f32 %v618, 0.1
        %v659 = vmul.f32 %v619, 0.1
        %v660 = vmul.f32 %v620, 0.1
        %v661 = vmul.f32 %v621, 0.1
        %v662 = vmul.f32 %v622, 0.1
        %v663 = vmul.f32 %v623, 0.1
        %v664 = vsel %vm624, %v604, %v644
        %v665 = vsel %vm625, %v605, %v645
        %v666 = vsel %vm626, %v606, %v646
        %v667 = vsel %vm627, %v607, %v647
        %v668 = vsel %vm628, %v608, %v648
        %v669 = vsel %vm629, %v609, %v649
        %v670 = vsel %vm630, %v610, %v650
        %v671 = vsel %vm631, %v611, %v651
        %v672 = vsel %vm632, %v612, %v652
        %v673 = vsel %vm633, %v613, %v653
        %v674 = vsel %vm634, %v614, %v654
        %v675 = vsel %vm635, %v615, %v655
        %v676 = vsel %vm636, %v616, %v656
        %v677 = vsel %vm637, %v617, %v657
        %v678 = vsel %vm638, %v618, %v658
        %v679 = vsel %vm639, %v619, %v659
        %v680 = vsel %vm640, %v620, %v660
        %v681 = vsel %vm641, %v621, %v661
        %v682 = vsel %vm642, %v622, %v662
        %v683 = vsel %vm643, %v623, %v663
        %v684 = vstv %s397
        %v685 = vadd.s32 %v684, 1
        %v686 = vadd.s32 %v684, 2
        %v687 = vadd.s32 %v684, 3
        %v688 = vadd.s32 %v684, 4
        %v689 = vadd.s32 %v684, 5
        %v690 = vadd.s32 %v684, 6
        %v691 = vadd.s32 %v684, 7
        %v692 = vadd.s32 %v684, 8
        %v693 = vadd.s32 %v684, 9
        %vm694 = vcmp.ge.s32.totalorder %v684, 0
        %vm695 = vcmp.ge.s32.totalorder %v685, 0
        %vm696 = vcmp.ge.s32.totalorder %v686, 0
        %vm697 = vcmp.ge.s32.totalorder %v687, 0
        %vm698 = vcmp.ge.s32.totalorder %v688, 0
        %vm699 = vcmp.ge.s32.totalorder %v689, 0
        %vm700 = vcmp.ge.s32.totalorder %v690, 0
        %vm701 = vcmp.ge.s32.totalorder %v691, 0
        %vm702 = vcmp.ge.s32.totalorder %v692, 0
        %vm703 = vcmp.ge.s32.totalorder %v693, 0
        %vm704 = vcmp.lt.s32.totalorder %v684, 16
        %vm705 = vcmp.lt.s32.totalorder %v685, 16
        %vm706 = vcmp.lt.s32.totalorder %v686, 16
        %vm707 = vcmp.lt.s32.totalorder %v687, 16
        %vm708 = vcmp.lt.s32.totalorder %v688, 16
        %vm709 = vcmp.lt.s32.totalorder %v689, 16
        %vm710 = vcmp.lt.s32.totalorder %v690, 16
        %vm711 = vcmp.lt.s32.totalorder %v691, 16
        %vm712 = vcmp.lt.s32.totalorder %v692, 16
        %vm713 = vcmp.lt.s32.totalorder %v693, 16
        %vm714 = vmand %vm694, %vm704
        %vm715 = vmand %vm695, %vm705
        %vm716 = vmand %vm696, %vm706
        %vm717 = vmand %vm697, %vm707
        %vm718 = vmand %vm698, %vm708
        %vm719 = vmand %vm699, %vm709
        %vm720 = vmand %vm700, %vm710
        %vm721 = vmand %vm701, %vm711
        %vm722 = vmand %vm702, %vm712
        %vm723 = vmand %vm703, %vm713
        %v724 = vsel %vm714, 1, 0
        %v725 = vsel %vm715, 1, 0
        %v726 = vsel %vm716, 1, 0
        %v727 = vsel %vm717, 1, 0
        %v728 = vsel %vm718, 1, 0
        %v729 = vsel %vm719, 1, 0
        %v730 = vsel %vm720, 1, 0
        %v731 = vsel %vm721, 1, 0
        %v732 = vsel %vm722, 1, 0
        %v733 = vsel %vm723, 1, 0
        %vm734 = vcmp.eq.s32.totalorder %v724, 1
        %vm735 = vcmp.eq.s32.totalorder %v725, 1
        %vm736 = vcmp.eq.s32.totalorder %v726, 1
        %vm737 = vcmp.eq.s32.totalorder %v727, 1
        %vm738 = vcmp.eq.s32.totalorder %v728, 1
        %vm739 = vcmp.eq.s32.totalorder %v729, 1
        %vm740 = vcmp.eq.s32.totalorder %v730, 1
        %vm741 = vcmp.eq.s32.totalorder %v731, 1
        %vm742 = vcmp.eq.s32.totalorder %v732, 1
        %vm743 = vcmp.eq.s32.totalorder %v733, 1
        %v744 = vsel %vm734, %v664, 0.0
        %v745 = vsel %vm734, %v665, 0.0
        %v746 = vsel %vm735, %v666, 0.0
        %v747 = vsel %vm735, %v667, 0.0
        %v748 = vsel %vm736, %v668, 0.0
        %v749 = vsel %vm736, %v669, 0.0
        %v750 = vsel %vm737, %v670, 0.0
        %v751 = vsel %vm737, %v671, 0.0
        %v752 = vsel %vm738, %v672, 0.0
        %v753 = vsel %vm738, %v673, 0.0
        %v754 = vsel %vm739, %v674, 0.0
        %v755 = vsel %vm739, %v675, 0.0
        %v756 = vsel %vm740, %v676, 0.0
        %v757 = vsel %vm740, %v677, 0.0
        %v758 = vsel %vm741, %v678, 0.0
        %v759 = vsel %vm741, %v679, 0.0
        %v760 = vsel %vm742, %v680, 0.0
        %v761 = vsel %vm742, %v681, 0.0
        %v762 = vsel %vm743, %v682, 0.0
        %v763 = vsel %vm743, %v683, 0.0
        %vm784 = vcmask 1040384
        %v785 = vrot.slane %v744, 7
        %v786 = vrot.slane %v745, 7
        %v787 = vsel %vm784, %v785, %v786
        %v788 = vrot.slane %v746, 7
        %v789 = vrot.slane %v747, 7
        %v790 = vsel %vm784, %v788, %v789
        %v791 = vrot.slane %v748, 7
        %v792 = vrot.slane %v749, 7
        %v793 = vsel %vm784, %v791, %v792
        %v794 = vrot.slane %v750, 7
        %v795 = vrot.slane %v751, 7
        %v796 = vsel %vm784, %v794, %v795
        %v797 = vrot.slane %v752, 7
        %v798 = vrot.slane %v753, 7
        %v799 = vsel %vm784, %v797, %v798
        %v800 = vrot.slane %v754, 7
        %v801 = vrot.slane %v755, 7
        %v802 = vsel %vm784, %v800, %v801
        %v803 = vrot.slane %v756, 7
        %v804 = vrot.slane %v757, 7
        %v805 = vsel %vm784, %v803, %v804
        %v806 = vrot.slane %v758, 7
        %v807 = vrot.slane %v759, 7
        %v808 = vsel %vm784, %v806, %v807
        %v809 = vrot.slane %v760, 7
        %v810 = vrot.slane %v761, 7
        %v811 = vsel %vm784, %v809, %v810
        %v812 = vrot.slane %v762, 7
        %v813 = vrot.slane %v763, 7
        %v814 = vsel %vm784, %v812, %v813
        %v843 = vsel %vm784, 0.0, %v785
        %v844 = vsel %vm784, 0.0, %v788
        %v845 = vsel %vm784, 0.0, %v791
        %v846 = vsel %vm784, 0.0, %v794
        %v847 = vsel %vm784, 0.0, %v797
        %v848 = vsel %vm784, 0.0, %v800
        %v849 = vsel %vm784, 0.0, %v803
        %v850 = vsel %vm784, 0.0, %v806
        %v851 = vsel %vm784, 0.0, %v809
        %v852 = vsel %vm784, 0.0, %v812
        %v853 = vsel %vm784, %v786, 0.0
        %v854 = vsel %vm784, %v789, 0.0
        %v855 = vsel %vm784, %v792, 0.0
        %v856 = vsel %vm784, %v795, 0.0
        %v857 = vsel %vm784, %v798, 0.0
        %v858 = vsel %vm784, %v801, 0.0
        %v859 = vsel %vm784, %v804, 0.0
        %v860 = vsel %vm784, %v807, 0.0
        %v861 = vsel %vm784, %v810, 0.0
        %v862 = vsel %vm784, %v813, 0.0
        %vm879 = vcmask 1046528
        %v880 = vrot.slane %v843, 1
        %v881 = vrot.slane %v787, 1
        %v882 = vsel %vm879, %v880, %v881
        %v883 = vrot.slane %v853, 1
        %v884 = vsel %vm879, %v881, %v883
        %v885 = vrot.slane %v844, 1
        %v886 = vrot.slane %v790, 1
        %v887 = vsel %vm879, %v885, %v886
        %v888 = vrot.slane %v854, 1
        %v889 = vsel %vm879, %v886, %v888
        %v890 = vrot.slane %v845, 1
        %v891 = vrot.slane %v793, 1
        %v892 = vsel %vm879, %v890, %v891
        %v893 = vrot.slane %v855, 1
        %v894 = vsel %vm879, %v891, %v893
        %v895 = vrot.slane %v846, 1
        %v896 = vrot.slane %v796, 1
        %v897 = vsel %vm879, %v895, %v896
        %v898 = vrot.slane %v856, 1
        %v899 = vsel %vm879, %v896, %v898
        %v900 = vrot.slane %v847, 1
        %v901 = vrot.slane %v799, 1
        %v902 = vsel %vm879, %v900, %v901
        %v903 = vrot.slane %v857, 1
        %v904 = vsel %vm879, %v901, %v903
        %v905 = vrot.slane %v848, 1
        %v906 = vrot.slane %v802, 1
        %v907 = vsel %vm879, %v905, %v906
        %v908 = vrot.slane %v858, 1
        %v909 = vsel %vm879, %v906, %v908
        %v910 = vrot.slane %v849, 1
        %v911 = vrot.slane %v805, 1
        %v912 = vsel %vm879, %v910, %v911
        %v913 = vrot.slane %v859, 1
        %v914 = vsel %vm879, %v911, %v913
        %v915 = vrot.slane %v850, 1
        %v916 = vrot.slane %v808, 1
        %v917 = vsel %vm879, %v915, %v916
        %v918 = vrot.slane %v860, 1
        %v919 = vsel %vm879, %v916, %v918
        %vm920 = vcmask 1045504
        %v921 = vrot.slane %v843, 2
        %v922 = vrot.slane %v787, 2
        %v923 = vsel %vm920, %v921, %v922
        %v924 = vrot.slane %v853, 2
        %v925 = vsel %vm920, %v922, %v924
        %v926 = vrot.slane %v844, 2
        %v927 = vrot.slane %v790, 2
        %v928 = vsel %vm920, %v926, %v927
        %v929 = vrot.slane %v854, 2
        %v930 = vsel %vm920, %v927, %v929
        %v931 = vrot.slane %v845, 2
        %v932 = vrot.slane %v793, 2
        %v933 = vsel %vm920, %v931, %v932
        %v934 = vrot.slane %v855, 2
        %v935 = vsel %vm920, %v932, %v934
        %v936 = vrot.slane %v846, 2
        %v937 = vrot.slane %v796, 2
        %v938 = vsel %vm920, %v936, %v937
        %v939 = vrot.slane %v856, 2
        %v940 = vsel %vm920, %v937, %v939
        %v941 = vrot.slane %v847, 2
        %v942 = vrot.slane %v799, 2
        %v943 = vsel %vm920, %v941, %v942
        %v944 = vrot.slane %v857, 2
        %v945 = vsel %vm920, %v942, %v944
        %v946 = vrot.slane %v848, 2
        %v947 = vrot.slane %v802, 2
        %v948 = vsel %vm920, %v946, %v947
        %v949 = vrot.slane %v858, 2
        %v950 = vsel %vm920, %v947, %v949
        %v951 = vrot.slane %v849, 2
        %v952 = vrot.slane %v805, 2
        %v953 = vsel %vm920, %v951, %v952
        %v954 = vrot.slane %v859, 2
        %v955 = vsel %vm920, %v952, %v954
        %v956 = vrot.slane %v850, 2
        %v957 = vrot.slane %v808, 2
        %v958 = vsel %vm920, %v956, %v957
        %v959 = vrot.slane %v860, 2
        %v960 = vsel %vm920, %v957, %v959
        %v963 = vrot.slane %v851, 1
        %v964 = vrot.slane %v811, 1
        %v965 = vsel %vm879, %v963, %v964
        %v966 = vrot.slane %v861, 1
        %v967 = vsel %vm879, %v964, %v966
        %v968 = vrot.slane %v851, 2
        %v969 = vrot.slane %v811, 2
        %v970 = vsel %vm920, %v968, %v969
        %v971 = vrot.slane %v861, 2
        %v972 = vsel %vm920, %v969, %v971
        %v975 = vrot.slane %v852, 1
        %v976 = vrot.slane %v814, 1
        %v977 = vsel %vm879, %v975, %v976
        %v978 = vrot.slane %v862, 1
        %v979 = vsel %vm879, %v976, %v978
        %v980 = vrot.slane %v852, 2
        %v981 = vrot.slane %v814, 2
        %v982 = vsel %vm920, %v980, %v981
        %v983 = vrot.slane %v862, 2
        %v984 = vsel %vm920, %v981, %v983
        %985 = vrot.lane.b32.xlu0 %v882, 8
        %v986 = vpop.permute.xlu0 %985
        %987 = vrot.lane.b32.xlu0 %v884, 8
        %v988 = vpop.permute.xlu0 %987
        %989 = vrot.lane.b32.xlu0 %v887, 8
        %v990 = vpop.permute.xlu0 %989
        %991 = vrot.lane.b32.xlu0 %v889, 8
        %v992 = vpop.permute.xlu0 %991
        %993 = vrot.lane.b32.xlu0 %v892, 8
        %v994 = vpop.permute.xlu0 %993
        %995 = vrot.lane.b32.xlu0 %v894, 8
        %v996 = vpop.permute.xlu0 %995
        %997 = vrot.lane.b32.xlu0 %v897, 8
        %v998 = vpop.permute.xlu0 %997
        %999 = vrot.lane.b32.xlu0 %v899, 8
        %v1000 = vpop.permute.xlu0 %999
        %1001 = vrot.lane.b32.xlu0 %v902, 8
        %v1002 = vpop.permute.xlu0 %1001
        %1003 = vrot.lane.b32.xlu0 %v904, 8
        %v1004 = vpop.permute.xlu0 %1003
        %1005 = vrot.lane.b32.xlu0 %v907, 8
        %v1006 = vpop.permute.xlu0 %1005
        %1007 = vrot.lane.b32.xlu0 %v909, 8
        %v1008 = vpop.permute.xlu0 %1007
        %1009 = vrot.lane.b32.xlu0 %v912, 8
        %v1010 = vpop.permute.xlu0 %1009
        %1011 = vrot.lane.b32.xlu0 %v914, 8
        %v1012 = vpop.permute.xlu0 %1011
        %1013 = vrot.lane.b32.xlu0 %v917, 8
        %v1014 = vpop.permute.xlu0 %1013
        %1015 = vrot.lane.b32.xlu0 %v919, 8
        %v1016 = vpop.permute.xlu0 %1015
        %1033 = vrot.lane.b32.xlu0 %v923, 16
        %v1034 = vpop.permute.xlu0 %1033
        %1035 = vrot.lane.b32.xlu0 %v925, 16
        %v1036 = vpop.permute.xlu0 %1035
        %1037 = vrot.lane.b32.xlu0 %v928, 16
        %v1038 = vpop.permute.xlu0 %1037
        %1039 = vrot.lane.b32.xlu0 %v930, 16
        %v1040 = vpop.permute.xlu0 %1039
        %1041 = vrot.lane.b32.xlu0 %v933, 16
        %v1042 = vpop.permute.xlu0 %1041
        %1043 = vrot.lane.b32.xlu0 %v935, 16
        %v1044 = vpop.permute.xlu0 %1043
        %1045 = vrot.lane.b32.xlu0 %v938, 16
        %v1046 = vpop.permute.xlu0 %1045
        %1047 = vrot.lane.b32.xlu0 %v940, 16
        %v1048 = vpop.permute.xlu0 %1047
        %1049 = vrot.lane.b32.xlu0 %v943, 16
        %v1050 = vpop.permute.xlu0 %1049
        %1051 = vrot.lane.b32.xlu0 %v945, 16
        %v1052 = vpop.permute.xlu0 %1051
        %1053 = vrot.lane.b32.xlu0 %v948, 16
        %v1054 = vpop.permute.xlu0 %1053
        %1055 = vrot.lane.b32.xlu0 %v950, 16
        %v1056 = vpop.permute.xlu0 %1055
        %1057 = vrot.lane.b32.xlu0 %v953, 16
        %v1058 = vpop.permute.xlu0 %1057
        %1059 = vrot.lane.b32.xlu0 %v955, 16
        %v1060 = vpop.permute.xlu0 %1059
        %1061 = vrot.lane.b32.xlu0 %v958, 16
        %v1062 = vpop.permute.xlu0 %1061
        %1063 = vrot.lane.b32.xlu0 %v960, 16
        %v1064 = vpop.permute.xlu0 %1063
        %1081 = vrot.lane.b32.xlu0 %v844, 24
        %v1082 = vpop.permute.xlu0 %1081
        %1083 = vrot.lane.b32.xlu0 %v790, 24
        %v1084 = vpop.permute.xlu0 %1083
        %1085 = vrot.lane.b32.xlu0 %v845, 24
        %v1086 = vpop.permute.xlu0 %1085
        %1087 = vrot.lane.b32.xlu0 %v793, 24
        %v1088 = vpop.permute.xlu0 %1087
        %1089 = vrot.lane.b32.xlu0 %v846, 24
        %v1090 = vpop.permute.xlu0 %1089
        %1091 = vrot.lane.b32.xlu0 %v796, 24
        %v1092 = vpop.permute.xlu0 %1091
        %1093 = vrot.lane.b32.xlu0 %v847, 24
        %v1094 = vpop.permute.xlu0 %1093
        %1095 = vrot.lane.b32.xlu0 %v799, 24
        %v1096 = vpop.permute.xlu0 %1095
        %1097 = vrot.lane.b32.xlu0 %v848, 24
        %v1098 = vpop.permute.xlu0 %1097
        %1099 = vrot.lane.b32.xlu0 %v802, 24
        %v1100 = vpop.permute.xlu0 %1099
        %1101 = vrot.lane.b32.xlu0 %v849, 24
        %v1102 = vpop.permute.xlu0 %1101
        %1103 = vrot.lane.b32.xlu0 %v805, 24
        %v1104 = vpop.permute.xlu0 %1103
        %1105 = vrot.lane.b32.xlu0 %v850, 24
        %v1106 = vpop.permute.xlu0 %1105
        %1107 = vrot.lane.b32.xlu0 %v808, 24
        %v1108 = vpop.permute.xlu0 %1107
        %1109 = vrot.lane.b32.xlu0 %v851, 24
        %v1110 = vpop.permute.xlu0 %1109
        %1111 = vrot.lane.b32.xlu0 %v811, 24
        %v1112 = vpop.permute.xlu0 %1111
        %1129 = vrot.lane.b32.xlu0 %v887, 32
        %v1130 = vpop.permute.xlu0 %1129
        %1131 = vrot.lane.b32.xlu0 %v889, 32
        %v1132 = vpop.permute.xlu0 %1131
        %1133 = vrot.lane.b32.xlu0 %v892, 32
        %v1134 = vpop.permute.xlu0 %1133
        %1135 = vrot.lane.b32.xlu0 %v894, 32
        %v1136 = vpop.permute.xlu0 %1135
        %1137 = vrot.lane.b32.xlu0 %v897, 32
        %v1138 = vpop.permute.xlu0 %1137
        %1139 = vrot.lane.b32.xlu0 %v899, 32
        %v1140 = vpop.permute.xlu0 %1139
        %1141 = vrot.lane.b32.xlu0 %v902, 32
        %v1142 = vpop.permute.xlu0 %1141
        %1143 = vrot.lane.b32.xlu0 %v904, 32
        %v1144 = vpop.permute.xlu0 %1143
        %1145 = vrot.lane.b32.xlu0 %v907, 32
        %v1146 = vpop.permute.xlu0 %1145
        %1147 = vrot.lane.b32.xlu0 %v909, 32
        %v1148 = vpop.permute.xlu0 %1147
        %1149 = vrot.lane.b32.xlu0 %v912, 32
        %v1150 = vpop.permute.xlu0 %1149
        %1151 = vrot.lane.b32.xlu0 %v914, 32
        %v1152 = vpop.permute.xlu0 %1151
        %1153 = vrot.lane.b32.xlu0 %v917, 32
        %v1154 = vpop.permute.xlu0 %1153
        %1155 = vrot.lane.b32.xlu0 %v919, 32
        %v1156 = vpop.permute.xlu0 %1155
        %1157 = vrot.lane.b32.xlu0 %v965, 32
        %v1158 = vpop.permute.xlu0 %1157
        %1159 = vrot.lane.b32.xlu0 %v967, 32
        %v1160 = vpop.permute.xlu0 %1159
        %1177 = vrot.lane.b32.xlu0 %v928, 40
        %v1178 = vpop.permute.xlu0 %1177
        %1179 = vrot.lane.b32.xlu0 %v930, 40
        %v1180 = vpop.permute.xlu0 %1179
        %1181 = vrot.lane.b32.xlu0 %v933, 40
        %v1182 = vpop.permute.xlu0 %1181
        %1183 = vrot.lane.b32.xlu0 %v935, 40
        %v1184 = vpop.permute.xlu0 %1183
        %1185 = vrot.lane.b32.xlu0 %v938, 40
        %v1186 = vpop.permute.xlu0 %1185
        %1187 = vrot.lane.b32.xlu0 %v940, 40
        %v1188 = vpop.permute.xlu0 %1187
        %1189 = vrot.lane.b32.xlu0 %v943, 40
        %v1190 = vpop.permute.xlu0 %1189
        %1191 = vrot.lane.b32.xlu0 %v945, 40
        %v1192 = vpop.permute.xlu0 %1191
        %1193 = vrot.lane.b32.xlu0 %v948, 40
        %v1194 = vpop.permute.xlu0 %1193
        %1195 = vrot.lane.b32.xlu0 %v950, 40
        %v1196 = vpop.permute.xlu0 %1195
        %1197 = vrot.lane.b32.xlu0 %v953, 40
        %v1198 = vpop.permute.xlu0 %1197
        %1199 = vrot.lane.b32.xlu0 %v955, 40
        %v1200 = vpop.permute.xlu0 %1199
        %1201 = vrot.lane.b32.xlu0 %v958, 40
        %v1202 = vpop.permute.xlu0 %1201
        %1203 = vrot.lane.b32.xlu0 %v960, 40
        %v1204 = vpop.permute.xlu0 %1203
        %1205 = vrot.lane.b32.xlu0 %v970, 40
        %v1206 = vpop.permute.xlu0 %1205
        %1207 = vrot.lane.b32.xlu0 %v972, 40
        %v1208 = vpop.permute.xlu0 %1207
        %1225 = vrot.lane.b32.xlu0 %v845, 48
        %v1226 = vpop.permute.xlu0 %1225
        %1227 = vrot.lane.b32.xlu0 %v793, 48
        %v1228 = vpop.permute.xlu0 %1227
        %1229 = vrot.lane.b32.xlu0 %v846, 48
        %v1230 = vpop.permute.xlu0 %1229
        %1231 = vrot.lane.b32.xlu0 %v796, 48
        %v1232 = vpop.permute.xlu0 %1231
        %1233 = vrot.lane.b32.xlu0 %v847, 48
        %v1234 = vpop.permute.xlu0 %1233
        %1235 = vrot.lane.b32.xlu0 %v799, 48
        %v1236 = vpop.permute.xlu0 %1235
        %1237 = vrot.lane.b32.xlu0 %v848, 48
        %v1238 = vpop.permute.xlu0 %1237
        %1239 = vrot.lane.b32.xlu0 %v802, 48
        %v1240 = vpop.permute.xlu0 %1239
        %1241 = vrot.lane.b32.xlu0 %v849, 48
        %v1242 = vpop.permute.xlu0 %1241
        %1243 = vrot.lane.b32.xlu0 %v805, 48
        %v1244 = vpop.permute.xlu0 %1243
        %1245 = vrot.lane.b32.xlu0 %v850, 48
        %v1246 = vpop.permute.xlu0 %1245
        %1247 = vrot.lane.b32.xlu0 %v808, 48
        %v1248 = vpop.permute.xlu0 %1247
        %1249 = vrot.lane.b32.xlu0 %v851, 48
        %v1250 = vpop.permute.xlu0 %1249
        %1251 = vrot.lane.b32.xlu0 %v811, 48
        %v1252 = vpop.permute.xlu0 %1251
        %1253 = vrot.lane.b32.xlu0 %v852, 48
        %v1254 = vpop.permute.xlu0 %1253
        %1255 = vrot.lane.b32.xlu0 %v814, 48
        %v1256 = vpop.permute.xlu0 %1255
        %1273 = vrot.lane.b32.xlu0 %v892, 56
        %v1274 = vpop.permute.xlu0 %1273
        %1275 = vrot.lane.b32.xlu0 %v894, 56
        %v1276 = vpop.permute.xlu0 %1275
        %1277 = vrot.lane.b32.xlu0 %v897, 56
        %v1278 = vpop.permute.xlu0 %1277
        %1279 = vrot.lane.b32.xlu0 %v899, 56
        %v1280 = vpop.permute.xlu0 %1279
        %1281 = vrot.lane.b32.xlu0 %v902, 56
        %v1282 = vpop.permute.xlu0 %1281
        %1283 = vrot.lane.b32.xlu0 %v904, 56
        %v1284 = vpop.permute.xlu0 %1283
        %1285 = vrot.lane.b32.xlu0 %v907, 56
        %v1286 = vpop.permute.xlu0 %1285
        %1287 = vrot.lane.b32.xlu0 %v909, 56
        %v1288 = vpop.permute.xlu0 %1287
        %1289 = vrot.lane.b32.xlu0 %v912, 56
        %v1290 = vpop.permute.xlu0 %1289
        %1291 = vrot.lane.b32.xlu0 %v914, 56
        %v1292 = vpop.permute.xlu0 %1291
        %1293 = vrot.lane.b32.xlu0 %v917, 56
        %v1294 = vpop.permute.xlu0 %1293
        %1295 = vrot.lane.b32.xlu0 %v919, 56
        %v1296 = vpop.permute.xlu0 %1295
        %1297 = vrot.lane.b32.xlu0 %v965, 56
        %v1298 = vpop.permute.xlu0 %1297
        %1299 = vrot.lane.b32.xlu0 %v967, 56
        %v1300 = vpop.permute.xlu0 %1299
        %1301 = vrot.lane.b32.xlu0 %v977, 56
        %v1302 = vpop.permute.xlu0 %1301
        %1303 = vrot.lane.b32.xlu0 %v979, 56
        %v1304 = vpop.permute.xlu0 %1303
        %1321 = vrot.lane.b32.xlu0 %v933, 64
        %v1322 = vpop.permute.xlu0 %1321
        %1323 = vrot.lane.b32.xlu0 %v935, 64
        %v1324 = vpop.permute.xlu0 %1323
        %1325 = vrot.lane.b32.xlu0 %v938, 64
        %v1326 = vpop.permute.xlu0 %1325
        %1327 = vrot.lane.b32.xlu0 %v940, 64
        %v1328 = vpop.permute.xlu0 %1327
        %1329 = vrot.lane.b32.xlu0 %v943, 64
        %v1330 = vpop.permute.xlu0 %1329
        %1331 = vrot.lane.b32.xlu0 %v945, 64
        %v1332 = vpop.permute.xlu0 %1331
        %1333 = vrot.lane.b32.xlu0 %v948, 64
        %v1334 = vpop.permute.xlu0 %1333
        %1335 = vrot.lane.b32.xlu0 %v950, 64
        %v1336 = vpop.permute.xlu0 %1335
        %1337 = vrot.lane.b32.xlu0 %v953, 64
        %v1338 = vpop.permute.xlu0 %1337
        %1339 = vrot.lane.b32.xlu0 %v955, 64
        %v1340 = vpop.permute.xlu0 %1339
        %1341 = vrot.lane.b32.xlu0 %v958, 64
        %v1342 = vpop.permute.xlu0 %1341
        %1343 = vrot.lane.b32.xlu0 %v960, 64
        %v1344 = vpop.permute.xlu0 %1343
        %1345 = vrot.lane.b32.xlu0 %v970, 64
        %v1346 = vpop.permute.xlu0 %1345
        %1347 = vrot.lane.b32.xlu0 %v972, 64
        %v1348 = vpop.permute.xlu0 %1347
        %1349 = vrot.lane.b32.xlu0 %v982, 64
        %v1350 = vpop.permute.xlu0 %1349
        %1351 = vrot.lane.b32.xlu0 %v984, 64
        %v1352 = vpop.permute.xlu0 %1351
        %vm1369 = vcmask 64512
        %v1370 = vsel %vm1369, %v843, %v986
        %v1371 = vsel %vm1369, %v787, %v988
        %v1372 = vsel %vm1369, %v844, %v990
        %v1373 = vsel %vm1369, %v790, %v992
        %v1374 = vsel %vm1369, %v845, %v994
        %v1375 = vsel %vm1369, %v793, %v996
        %v1376 = vsel %vm1369, %v846, %v998
        %v1377 = vsel %vm1369, %v796, %v1000
        %v1378 = vsel %vm1369, %v847, %v1002
        %v1379 = vsel %vm1369, %v799, %v1004
        %v1380 = vsel %vm1369, %v848, %v1006
        %v1381 = vsel %vm1369, %v802, %v1008
        %v1382 = vsel %vm1369, %v849, %v1010
        %v1383 = vsel %vm1369, %v805, %v1012
        %v1384 = vsel %vm1369, %v850, %v1014
        %v1385 = vsel %vm1369, %v808, %v1016
        %v1386 = vsel %vm486, %v1370, %v1034
        %v1387 = vsel %vm486, %v1371, %v1036
        %v1388 = vsel %vm486, %v1372, %v1038
        %v1389 = vsel %vm486, %v1373, %v1040
        %v1390 = vsel %vm486, %v1374, %v1042
        %v1391 = vsel %vm486, %v1375, %v1044
        %v1392 = vsel %vm486, %v1376, %v1046
        %v1393 = vsel %vm486, %v1377, %v1048
        %v1394 = vsel %vm486, %v1378, %v1050
        %v1395 = vsel %vm486, %v1379, %v1052
        %v1396 = vsel %vm486, %v1380, %v1054
        %v1397 = vsel %vm486, %v1381, %v1056
        %v1398 = vsel %vm486, %v1382, %v1058
        %v1399 = vsel %vm486, %v1383, %v1060
        %v1400 = vsel %vm486, %v1384, %v1062
        %v1401 = vsel %vm486, %v1385, %v1064
        %vm1402 = vcmask 195584
        %v1403 = vsel %vm1402, %v1386, %v1082
        %v1404 = vsel %vm1402, %v1387, %v1084
        %v1405 = vsel %vm1402, %v1388, %v1086
        %v1406 = vsel %vm1402, %v1389, %v1088
        %v1407 = vsel %vm1402, %v1390, %v1090
        %v1408 = vsel %vm1402, %v1391, %v1092
        %v1409 = vsel %vm1402, %v1392, %v1094
        %v1410 = vsel %vm1402, %v1393, %v1096
        %v1411 = vsel %vm1402, %v1394, %v1098
        %v1412 = vsel %vm1402, %v1395, %v1100
        %v1413 = vsel %vm1402, %v1396, %v1102
        %v1414 = vsel %vm1402, %v1397, %v1104
        %v1415 = vsel %vm1402, %v1398, %v1106
        %v1416 = vsel %vm1402, %v1399, %v1108
        %v1417 = vsel %vm1402, %v1400, %v1110
        %v1418 = vsel %vm1402, %v1401, %v1112
        %vm1419 = vcmask 261120
        %v1420 = vsel %vm1419, %v1403, %v1130
        %v1421 = vsel %vm1419, %v1404, %v1132
        %v1422 = vsel %vm1419, %v1405, %v1134
        %v1423 = vsel %vm1419, %v1406, %v1136
        %v1424 = vsel %vm1419, %v1407, %v1138
        %v1425 = vsel %vm1419, %v1408, %v1140
        %v1426 = vsel %vm1419, %v1409, %v1142
        %v1427 = vsel %vm1419, %v1410, %v1144
        %v1428 = vsel %vm1419, %v1411, %v1146
        %v1429 = vsel %vm1419, %v1412, %v1148
        %v1430 = vsel %vm1419, %v1413, %v1150
        %v1431 = vsel %vm1419, %v1414, %v1152
        %v1432 = vsel %vm1419, %v1415, %v1154
        %v1433 = vsel %vm1419, %v1416, %v1156
        %v1434 = vsel %vm1419, %v1417, %v1158
        %v1435 = vsel %vm1419, %v1418, %v1160
        %vm1436 = vcmask 326656
        %v1437 = vsel %vm1436, %v1420, %v1178
        %v1438 = vsel %vm1436, %v1421, %v1180
        %v1439 = vsel %vm1436, %v1422, %v1182
        %v1440 = vsel %vm1436, %v1423, %v1184
        %v1441 = vsel %vm1436, %v1424, %v1186
        %v1442 = vsel %vm1436, %v1425, %v1188
        %v1443 = vsel %vm1436, %v1426, %v1190
        %v1444 = vsel %vm1436, %v1427, %v1192
        %v1445 = vsel %vm1436, %v1428, %v1194
        %v1446 = vsel %vm1436, %v1429, %v1196
        %v1447 = vsel %vm1436, %v1430, %v1198
        %v1448 = vsel %vm1436, %v1431, %v1200
        %v1449 = vsel %vm1436, %v1432, %v1202
        %v1450 = vsel %vm1436, %v1433, %v1204
        %v1451 = vsel %vm1436, %v1434, %v1206
        %v1452 = vsel %vm1436, %v1435, %v1208
        %vm1453 = vcmask 392192
        %v1454 = vsel %vm1453, %v1437, %v1226
        %v1455 = vsel %vm1453, %v1438, %v1228
        %v1456 = vsel %vm1453, %v1439, %v1230
        %v1457 = vsel %vm1453, %v1440, %v1232
        %v1458 = vsel %vm1453, %v1441, %v1234
        %v1459 = vsel %vm1453, %v1442, %v1236
        %v1460 = vsel %vm1453, %v1443, %v1238
        %v1461 = vsel %vm1453, %v1444, %v1240
        %v1462 = vsel %vm1453, %v1445, %v1242
        %v1463 = vsel %vm1453, %v1446, %v1244
        %v1464 = vsel %vm1453, %v1447, %v1246
        %v1465 = vsel %vm1453, %v1448, %v1248
        %v1466 = vsel %vm1453, %v1449, %v1250
        %v1467 = vsel %vm1453, %v1450, %v1252
        %v1468 = vsel %vm1453, %v1451, %v1254
        %v1469 = vsel %vm1453, %v1452, %v1256
        %vm1470 = vcmask 457728
        %v1471 = vsel %vm1470, %v1454, %v1274
        %v1472 = vsel %vm1470, %v1455, %v1276
        %v1473 = vsel %vm1470, %v1456, %v1278
        %v1474 = vsel %vm1470, %v1457, %v1280
        %v1475 = vsel %vm1470, %v1458, %v1282
        %v1476 = vsel %vm1470, %v1459, %v1284
        %v1477 = vsel %vm1470, %v1460, %v1286
        %v1478 = vsel %vm1470, %v1461, %v1288
        %v1479 = vsel %vm1470, %v1462, %v1290
        %v1480 = vsel %vm1470, %v1463, %v1292
        %v1481 = vsel %vm1470, %v1464, %v1294
        %v1482 = vsel %vm1470, %v1465, %v1296
        %v1483 = vsel %vm1470, %v1466, %v1298
        %v1484 = vsel %vm1470, %v1467, %v1300
        %v1485 = vsel %vm1470, %v1468, %v1302
        %v1486 = vsel %vm1470, %v1469, %v1304
        %vm1487 = vcmask 523264
        %v1488 = vsel %vm1487, %v1471, %v1322
        %v1489 = vsel %vm1487, %v1472, %v1324
        %v1490 = vsel %vm1487, %v1473, %v1326
        %v1491 = vsel %vm1487, %v1474, %v1328
        %v1492 = vsel %vm1487, %v1475, %v1330
        %v1493 = vsel %vm1487, %v1476, %v1332
        %v1494 = vsel %vm1487, %v1477, %v1334
        %v1495 = vsel %vm1487, %v1478, %v1336
        %v1496 = vsel %vm1487, %v1479, %v1338
        %v1497 = vsel %vm1487, %v1480, %v1340
        %v1498 = vsel %vm1487, %v1481, %v1342
        %v1499 = vsel %vm1487, %v1482, %v1344
        %v1500 = vsel %vm1487, %v1483, %v1346
        %v1501 = vsel %vm1487, %v1484, %v1348
        %v1502 = vsel %vm1487, %v1485, %v1350
        %v1503 = vsel %vm1487, %v1486, %v1352
        %v1504 = vpack.c.bf16 %v1489, %v1488
        %v1505 = vpack.c.bf16 %v1491, %v1490
        %v1506 = vpack.c.bf16 %v1493, %v1492
        %v1507 = vpack.c.bf16 %v1495, %v1494
        %v1508 = vpack.c.bf16 %v1497, %v1496
        %v1509 = vpack.c.bf16 %v1499, %v1498
        %v1510 = vpack.c.bf16 %v1501, %v1500
        %v1511 = vpack.c.bf16 %v1503, %v1502
        %v1512 = vld [vmem:[%s5] sm:$0xf]
        %v1513 = vld [vmem:[%s5 + $0x4] sm:$0xf]
        %v1514 = vld [vmem:[%s5 + $0x8] sm:$0xf]
        %v1515 = vld [vmem:[%s5 + $0xc] sm:$0xf]
        %v1516 = vld [vmem:[%s5 + $0x10] sm:$0xf]
        %v1517 = vld [vmem:[%s5 + $0x14] sm:$0xf]
        %v1518 = vld [vmem:[%s5 + $0x18] sm:$0xf]
        %v1519 = vld [vmem:[%s5 + $0x1c] sm:$0xf]
        %v1520 = vld [vmem:[%s5 + $0x20] sm:$0xf]
        %v1530 = vunpack.c.l.b16 %v1512
        %v1531 = vunpack.c.l.b16 %v1513
        %v1532 = vunpack.c.l.b16 %v1514
        %v1533 = vunpack.c.l.b16 %v1515
        %v1534 = vunpack.c.l.b16 %v1516
        %v1535 = vunpack.c.l.b16 %v1517
        %v1536 = vunpack.c.l.b16 %v1518
        %v1537 = vunpack.c.l.b16 %v1519
        %v1538 = vunpack.c.l.b16 %v1520
        %v1539 = vpack.c.b16 %v1531, %v1530
        %v1540 = vpack.c.b16 %v1533, %v1532
        %v1541 = vpack.c.b16 %v1535, %v1534
        %v1542 = vpack.c.b16 %v1537, %v1536
        %v1543 = vpack.c.b16 %v1538, %v1538
        %vm1548 = vcmask 588800
        %v1550 = vsel %vm1548, %v1504, 0
        %v1553 = vsel %vm1548, %v1505, 0
        %v1556 = vsel %vm1548, %v1506, 0
        %v1559 = vsel %vm1548, %v1507, 0
        %v1562 = vsel %vm1548, %v1508, 0
        %v1565 = vsel %vm1548, %v1509, 0
        %v1568 = vsel %vm1548, %v1510, 0
        %v1571 = vsel %vm1548, %v1511, 0
        %vm1573 = vcmask 1043456
        %v1575 = vsel %vm1573, %v1543, 0
        %1577 = vmatpush.bf16.msra.mxu0 0
        %1578 = vmatpush.bf16.msra.mxu0 0
        %1579 = vmatpush.bf16.msra.mxu0 0
        %1580 = vmatpush.bf16.msra.mxu0 %v1575
        %1581 = vmatpush.bf16.msra.mxu0 %v1542
        %1582 = vmatpush.bf16.msra.mxu0 %v1541
        %1583 = vmatpush.bf16.msra.mxu0 %v1540
        %1584 = vmatpush.bf16.msra.mxu0 %v1539
        %1585 = vmatmul.bf16.gmra.mxu0 %v1550
        %v1586 = vpop.f32.mrf.mxu0
        %v1587 = vadd.f32 0.0, %v1586
        %v1588 = vpop.f32.mrf.mxu0
        %v1589 = vadd.f32 0.0, %v1588
        %1590 = vmatmul.bf16.gmra.mxu0 %v1553
        %v1591 = vpop.f32.mrf.mxu0
        %v1592 = vadd.f32 0.0, %v1591
        %v1593 = vpop.f32.mrf.mxu0
        %v1594 = vadd.f32 0.0, %v1593
        %1595 = vmatmul.bf16.gmra.mxu0 %v1556
        %v1596 = vpop.f32.mrf.mxu0
        %v1597 = vadd.f32 0.0, %v1596
        %v1598 = vpop.f32.mrf.mxu0
        %v1599 = vadd.f32 0.0, %v1598
        %1600 = vmatmul.bf16.gmra.mxu0 %v1559
        %v1601 = vpop.f32.mrf.mxu0
        %v1602 = vadd.f32 0.0, %v1601
        %v1603 = vpop.f32.mrf.mxu0
        %v1604 = vadd.f32 0.0, %v1603
        %1605 = vmatmul.bf16.gmra.mxu0 %v1562
        %v1606 = vpop.f32.mrf.mxu0
        %v1607 = vadd.f32 0.0, %v1606
        %v1608 = vpop.f32.mrf.mxu0
        %v1609 = vadd.f32 0.0, %v1608
        %1610 = vmatmul.bf16.gmra.mxu0 %v1565
        %v1611 = vpop.f32.mrf.mxu0
        %v1612 = vadd.f32 0.0, %v1611
        %v1613 = vpop.f32.mrf.mxu0
        %v1614 = vadd.f32 0.0, %v1613
        %1615 = vmatmul.bf16.gmra.mxu0 %v1568
        %v1616 = vpop.f32.mrf.mxu0
        %v1617 = vadd.f32 0.0, %v1616
        %v1618 = vpop.f32.mrf.mxu0
        %v1619 = vadd.f32 0.0, %v1618
        %1620 = vmatmul.bf16.gmra.mxu0 %v1571
        %v1621 = vpop.f32.mrf.mxu0
        %v1622 = vadd.f32 0.0, %v1621
        %v1623 = vpop.f32.mrf.mxu0
        %v1624 = vadd.f32 0.0, %v1623
        %1625 = vdwg.mxu0
        %v1626 = vld [vmem:[%s6] sm:$0x1]
        %v1628 = vperm.slane %v1626, 0
        %v1630 = vmul.f32 %v1587, %v1628
        %v1631 = vmul.f32 %v1589, %v1628
        %v1632 = vmul.f32 %v1592, %v1628
        %v1633 = vmul.f32 %v1594, %v1628
        %v1634 = vmul.f32 %v1597, %v1628
        %v1635 = vmul.f32 %v1599, %v1628
        %v1636 = vmul.f32 %v1602, %v1628
        %v1637 = vmul.f32 %v1604, %v1628
        %v1638 = vmul.f32 %v1607, %v1628
        %v1639 = vmul.f32 %v1609, %v1628
        %v1640 = vmul.f32 %v1612, %v1628
        %v1641 = vmul.f32 %v1614, %v1628
        %v1642 = vmul.f32 %v1617, %v1628
        %v1643 = vmul.f32 %v1619, %v1628
        %v1644 = vmul.f32 %v1622, %v1628
        %v1645 = vmul.f32 %v1624, %v1628
        %v1646 = vld [vmem:[%s7] sm:$0x1]
        %v1648 = vperm.slane %v1646, 0
        %v1650 = vadd.f32 %v1630, %v1648
        %v1651 = vadd.f32 %v1631, %v1648
        %v1652 = vadd.f32 %v1632, %v1648
        %v1653 = vadd.f32 %v1633, %v1648
        %v1654 = vadd.f32 %v1634, %v1648
        %v1655 = vadd.f32 %v1635, %v1648
        %v1656 = vadd.f32 %v1636, %v1648
        %v1657 = vadd.f32 %v1637, %v1648
        %v1658 = vadd.f32 %v1638, %v1648
        %v1659 = vadd.f32 %v1639, %v1648
        %v1660 = vadd.f32 %v1640, %v1648
        %v1661 = vadd.f32 %v1641, %v1648
        %v1662 = vadd.f32 %v1642, %v1648
        %v1663 = vadd.f32 %v1643, %v1648
        %v1664 = vadd.f32 %v1644, %v1648
        %v1665 = vadd.f32 %v1645, %v1648
        %1666 = vst.msk [vmem:[%s380] sm:$0xff] %vm486, %v1650
        %1667 = vst.msk [vmem:[%s380 + $0x8] sm:$0xff] %vm486, %v1651
        %1668 = vst.msk [vmem:[%s380 + $0x10] sm:$0xff] %vm486, %v1652
        %1669 = vst.msk [vmem:[%s380 + $0x18] sm:$0xff] %vm486, %v1653
        %1670 = vst.msk [vmem:[%s380 + $0x20] sm:$0xff] %vm486, %v1654
        %1671 = vst.msk [vmem:[%s380 + $0x28] sm:$0xff] %vm486, %v1655
        %1672 = vst.msk [vmem:[%s380 + $0x30] sm:$0xff] %vm486, %v1656
        %1673 = vst.msk [vmem:[%s380 + $0x38] sm:$0xff] %vm486, %v1657
        %1674 = vst.msk [vmem:[%s380 + $0x40] sm:$0xff] %vm486, %v1658
        %1675 = vst.msk [vmem:[%s380 + $0x48] sm:$0xff] %vm486, %v1659
        %1676 = vst.msk [vmem:[%s380 + $0x50] sm:$0xff] %vm486, %v1660
        %1677 = vst.msk [vmem:[%s380 + $0x58] sm:$0xff] %vm486, %v1661
        %1678 = vst.msk [vmem:[%s380 + $0x60] sm:$0xff] %vm486, %v1662
        %1679 = vst.msk [vmem:[%s380 + $0x68] sm:$0xff] %vm486, %v1663
        %1680 = vst.msk [vmem:[%s380 + $0x70] sm:$0xff] %vm486, %v1664
        %1681 = vst.msk [vmem:[%s380 + $0x78] sm:$0xff] %vm486, %v1665
        %v1682 = vsel %vm486, %v1650, 0.0
        %v1683 = vsel %vm486, %v1651, 0.0
        %v1684 = vadd.f32 %v1682, %v1683
        %v1685 = vsel %vm486, %v1652, 0.0
        %v1686 = vadd.f32 %v1684, %v1685
        %v1687 = vsel %vm486, %v1653, 0.0
        %v1688 = vadd.f32 %v1686, %v1687
        %v1689 = vsel %vm486, %v1654, 0.0
        %v1690 = vadd.f32 %v1688, %v1689
        %v1691 = vsel %vm486, %v1655, 0.0
        %v1692 = vadd.f32 %v1690, %v1691
        %v1693 = vsel %vm486, %v1656, 0.0
        %v1694 = vadd.f32 %v1692, %v1693
        %v1695 = vsel %vm486, %v1657, 0.0
        %v1696 = vadd.f32 %v1694, %v1695
        %v1697 = vsel %vm486, %v1658, 0.0
        %v1698 = vadd.f32 %v1696, %v1697
        %v1699 = vsel %vm486, %v1659, 0.0
        %v1700 = vadd.f32 %v1698, %v1699
        %v1701 = vsel %vm486, %v1660, 0.0
        %v1702 = vadd.f32 %v1700, %v1701
        %v1703 = vsel %vm486, %v1661, 0.0
        %v1704 = vadd.f32 %v1702, %v1703
        %v1705 = vsel %vm486, %v1662, 0.0
        %v1706 = vadd.f32 %v1704, %v1705
        %v1707 = vsel %vm486, %v1663, 0.0
        %v1708 = vadd.f32 %v1706, %v1707
        %v1709 = vsel %vm486, %v1664, 0.0
        %v1710 = vadd.f32 %v1708, %v1709
        %v1711 = vsel %vm486, %v1665, 0.0
        %v1712 = vadd.f32 %v1710, %v1711
        %v1713 = vrot.slane %v1712, 4
        %v1714 = vadd.f32 %v1712, %v1713
        %v1715 = vrot.slane %v1714, 2
        %v1716 = vadd.f32 %v1714, %v1715
        %v1717 = vrot.slane %v1716, 1
        %v1718 = vadd.f32 %v1716, %v1717
        %vm1719 = vcmask 122880
        %1720 = vst.msk [vmem:[%s386] sm:$0x1] %vm1719, %v1718
        %v1721 = vsel %vm486, %v1650, -inf
        %v1722 = vsel %vm486, %v1651, -inf
        %v1723 = vsel %vm486, %v1652, -inf
        %v1724 = vsel %vm486, %v1653, -inf
        %v1725 = vsel %vm486, %v1654, -inf
        %v1726 = vmax.f32 %v1721, %v1725
        %v1727 = vsel %vm486, %v1655, -inf
        %v1728 = vmax.f32 %v1722, %v1727
        %v1729 = vsel %vm486, %v1656, -inf
        %v1730 = vmax.f32 %v1723, %v1729
        %v1731 = vsel %vm486, %v1657, -inf
        %v1732 = vmax.f32 %v1724, %v1731
        %v1733 = vsel %vm486, %v1658, -inf
        %v1734 = vmax.f32 %v1726, %v1733
        %v1735 = vsel %vm486, %v1659, -inf
        %v1736 = vmax.f32 %v1728, %v1735
        %v1737 = vsel %vm486, %v1660, -inf
        %v1738 = vmax.f32 %v1730, %v1737
        %v1739 = vsel %vm486, %v1661, -inf
        %v1740 = vmax.f32 %v1732, %v1739
        %v1741 = vsel %vm486, %v1662, -inf
        %v1742 = vmax.f32 %v1734, %v1741
        %v1743 = vsel %vm486, %v1663, -inf
        %v1744 = vmax.f32 %v1736, %v1743
        %v1745 = vsel %vm486, %v1664, -inf
        %v1746 = vmax.f32 %v1738, %v1745
        %v1747 = vsel %vm486, %v1665, -inf
        %v1748 = vmax.f32 %v1740, %v1747
        %v1749 = vmax.f32 %v1742, %v1744
        %v1750 = vmax.f32 %v1746, %v1748
        %v1751 = vmax.f32 %v1749, %v1750
        %v1752 = vrot.slane %v1751, 4
        %v1753 = vmax.f32 %v1751, %v1752
        %v1754 = vrot.slane %v1753, 2
        %v1755 = vmax.f32 %v1753, %v1754
        %v1756 = vrot.slane %v1755, 1
        %v1757 = vmax.f32 %v1755, %v1756
        %1758 = vst.msk [vmem:[%s392] sm:$0x1] %vm1719, %v1757
        %s1759 = sand.u32 %s207, 1
        %s1760 = scalar_lea.sflag [#allocation5], %s1759
        %s1761 = sand.u32 %s207, 1
        %s1762 = smul.addr %s1761, 128
        %s1763 = scalar_lea.vmem [#allocation6], %s1762
        %s1764 = sand.u32 %s31, 1
        %s1765 = scalar_lea.sflag [#allocation8], %s1764
        %s1766 = sand.u32 %s235, 1
        %s1767 = scalar_lea.vmem [#allocation7], %s1766
        %s1768 = sand.u32 %s31, 1
        %s1769 = scalar_lea.sflag [#allocation8], %s1768
        %s1770 = sand.u32 %s263, 1
        %s1771 = scalar_lea.vmem [#allocation9], %s1770
        // Predicated region
        $region63: #{tpu_custom_call.1} parent=47 // pred_check
          %p1772 = pneg %p217
        $region64: #{tpu_custom_call.1} parent=47 // pred_check_branch
          %1774 = sbr.rel (%p1772) target = $region66
        $region65: #{tpu_custom_call.1} parent=47 // pred_region
          %s1775 = smul.u32 8, %s36
          %1777 = vsyncadd %s1760, 0
          %s1778 = smul.addr %s1775, 2
          %s1779 = smul.addr %s35, 32
          %s1780 = sadd.s32 %s1778, %s1779
          %s1781 = smul.addr %s1780, 8
          %s1782 = scalar_lea.hbm %s8, %s1781
          %s1783 = sshll.u32 %s1763, 4
          %s1784 = int_to_ptr.vmem [resolvable:$true] %s1783
          %s1785 = sshll.u32 %s1782, 4
          %s1786 = int_to_ptr.hbm [resolvable:$true] %s1785
          %1791 = dma.vmem_to_hbm [thread:$0]  %s1784, 2048, %s1786, %s1760, 128, 128, 8
        $region66: #{tpu_custom_call.1} parent=47 // pred_fallthru
          _
        // Predicated region
        $region67: #{tpu_custom_call.1} parent=47 // pred_check
          %p1792 = pneg %p245
        $region68: #{tpu_custom_call.1} parent=47 // pred_check_branch
          %1794 = sbr.rel (%p1792) target = $region70
        $region69: #{tpu_custom_call.1} parent=47 // pred_region
          %1796 = vsyncadd %s1765, 0
          %s1797 = smul.addr %s35, 2
          %s1798 = sadd.s32 %s36, %s1797
          %s1799 = scalar_lea.hbm %s9, %s1798
          %s1801 = sshll.u32 %s1767, 4
          %s1802 = int_to_ptr.vmem [resolvable:$true] %s1801
          %s1803 = sshll.u32 %s1799, 4
          %s1804 = int_to_ptr.hbm [resolvable:$true] %s1803
          %1806 = dma.vmem_to_hbm [thread:$0]  %s1802, 16, %s1804, %s1765
        $region70: #{tpu_custom_call.1} parent=47 // pred_fallthru
          _
        // Predicated region
        $region71: #{tpu_custom_call.1} parent=47 // pred_check
          %p1807 = pneg %p273
        $region72: #{tpu_custom_call.1} parent=47 // pred_check_branch
          %1809 = sbr.rel (%p1807) target = $region74
        $region73: #{tpu_custom_call.1} parent=47 // pred_region
          %1811 = vsyncadd %s1769, 0
          %s1812 = smul.addr %s35, 2
          %s1813 = sadd.s32 %s36, %s1812
          %s1814 = scalar_lea.hbm %s10, %s1813
          %s1816 = sshll.u32 %s1771, 4
          %s1817 = int_to_ptr.vmem [resolvable:$true] %s1816
          %s1818 = sshll.u32 %s1814, 4
          %s1819 = int_to_ptr.hbm [resolvable:$true] %s1818
          %1821 = dma.vmem_to_hbm [thread:$0]  %s1817, 16, %s1819, %s1769
        $region74: #{tpu_custom_call.1} parent=47 // pred_fallthru
          _
      $region48: #{tpu_custom_call.1} parent=5 // pred_fallthru
        _
      %p1822 = scmp.le.s32.totalorder 2, %s26
      // Predicated region
      $region75: #{tpu_custom_call.1} parent=5 // pred_check
        %p1823 = pneg %p1822
      $region76: #{tpu_custom_call.1} parent=5 // pred_check_branch
        %1825 = sbr.rel (%p1823) target = $region78
      $region77: #{tpu_custom_call.1} parent=5 // pred_region
        %s1826 = ssub.s32 %s26, 2
        // Predicated region
        $region79: #{tpu_custom_call.1} parent=77 // pred_check
          %p1827 = pneg %p223
        $region80: #{tpu_custom_call.1} parent=77 // pred_check_branch
          %1829 = sbr.rel (%p1827) target = $region82
        $region81: #{tpu_custom_call.1} parent=77 // pred_region
          %s1830 = sand.u32 %s208, 1
          %s1831 = scalar_lea.sflag [#allocation5], %s1830
          %s1832 = sand.u32 %s208, 1
          %s1833 = smul.addr %s1832, 128
          %s1834 = scalar_lea.vmem [#allocation6], %s1833
          %1836 = dma.done %s1831, 2048
        $region82: #{tpu_custom_call.1} parent=77 // pred_fallthru
          _
        // Predicated region
        $region83: #{tpu_custom_call.1} parent=77 // pred_check
          %p1837 = pneg %p251
        $region84: #{tpu_custom_call.1} parent=77 // pred_check_branch
          %1839 = sbr.rel (%p1837) target = $region86
        $region85: #{tpu_custom_call.1} parent=77 // pred_region
          %s1840 = sand.u32 %s32, 1
          %s1841 = scalar_lea.sflag [#allocation8], %s1840
          %s1842 = sand.u32 %s236, 1
          %s1843 = scalar_lea.vmem [#allocation7], %s1842
          %1845 = dma.done %s1841, 16
        $region86: #{tpu_custom_call.1} parent=77 // pred_fallthru
          _
        // Predicated region
        $region87: #{tpu_custom_call.1} parent=77 // pred_check
          %p1846 = pneg %p279
        $region88: #{tpu_custom_call.1} parent=77 // pred_check_branch
          %1848 = sbr.rel (%p1846) target = $region90
        $region89: #{tpu_custom_call.1} parent=77 // pred_region
          %s1849 = sand.u32 %s32, 1
          %s1850 = scalar_lea.sflag [#allocation8], %s1849
          %s1851 = sand.u32 %s264, 1
          %s1852 = scalar_lea.vmem [#allocation9], %s1851
          %1854 = dma.done %s1850, 16
        $region90: #{tpu_custom_call.1} parent=77 // pred_fallthru
          _
      $region78: #{tpu_custom_call.1} parent=5 // pred_fallthru
        _
    $region6: #{tpu_custom_call.1} parent=1 // loop_footer
      %s30 = sadd.s32 1, %s26
    $region7: #{tpu_custom_call.1} parent=1 // loop_footer_branch
      %25 = sbr.rel target = $region3
    $region8: #{tpu_custom_call.1} parent=1 // loop_exit
      _
    %1855 = vsyncpa [#allocation4], 1
    %s1856 = scalar_lea.sflag [#allocation4], 1
    %1857 = vsyncpa %s1856, 1
    %1858 = vsyncpa [#allocation5], 1
    %s1859 = scalar_lea.sflag [#allocation5], 1
    %1860 = vsyncpa %s1859, 1
    %1861 = vsyncpa [#allocation8], 1
    %s1862 = scalar_lea.sflag [#allocation8], 1
    %1863 = vsyncpa %s1862, 1

</llo_original>
